<compile_context>
chip_gen: v6e
topology: v6e:2x2x1
jax: 0.10.0
libtpu: 0.0.40
codegen_flags: <defaults>
</compile_context>

<pallas_src>
import math

import numpy as np
import jax
import jax.numpy as jnp
from jax import lax
from jax.experimental import pallas as pl
from jax.experimental.pallas import tpu as pltpu

SAMPLING_RATE = 16000
DOWN_SAMPLING_RATE = 160            # MFCCEncoder.DOWN_SAMPLING_RATE
N_FFT = 321                         # melkwargs["n_fft"]
HOP = N_FFT // 2                    # torchaudio default hop = win_length // 2 = 160
N_FREQ = N_FFT // 2 + 1             # onesided rFFT bins = 161
TOP_DB = 80.0                       # torchaudio.transforms.MFCC top_db
AMIN = 1e-10                        # amplitude_to_DB amin
LOG10_INV = 1.0 / math.log(10.0)

LANE = 128
MAX_TILE_T = 256                    # frames per time tile (MXU-friendly M)
N_FFT_PAD = 384                     # 321 -> 384
N_SPEC = 384                        # 2 * 161 = 322 -> 384


def _round_up(x, m):
    return ((x + m - 1) // m) * m


# ---------------------------------------------------------------------------
# Deterministic "parameters" (buffers of the torchaudio transforms), float64
# ---------------------------------------------------------------------------
def _hz_to_mel(f):
    return 2595.0 * np.log10(1.0 + np.asarray(f, np.float64) / 700.0)


def _mel_to_hz(m):
    return 700.0 * (10.0 ** (np.asarray(m, np.float64) / 2595.0) - 1.0)


def _make_hann(n_fft):
    # torch.hann_window(n_fft), periodic
    n = np.arange(n_fft, dtype=np.float64)
    return 0.5 - 0.5 * np.cos(2.0 * math.pi * n / n_fft)


def _make_dft(n_fft, n_freqs):
    # real/imag onesided DFT bases (power spectrum is sign invariant)
    n = np.arange(n_fft, dtype=np.float64)[:, None]
    k = np.arange(n_freqs, dtype=np.float64)[None, :]
    ang = 2.0 * math.pi * n * k / n_fft
    return np.cos(ang), -np.sin(ang)


def _make_mel_fb(n_freqs, f_min, f_max, n_mels, sample_rate):
    # torchaudio.functional.melscale_fbanks, mel_scale='htk', norm=None
    all_freqs = np.linspace(0.0, sample_rate / 2.0, n_freqs)
    m_pts = np.linspace(_hz_to_mel(f_min), _hz_to_mel(f_max), n_mels + 2)
    f_pts = _mel_to_hz(m_pts)
    f_diff = f_pts[1:] - f_pts[:-1]
    slopes = f_pts[None, :] - all_freqs[:, None]
    down = -slopes[:, :-2] / f_diff[:-1]
    up = slopes[:, 2:] / f_diff[1:]
    return np.maximum(0.0, np.minimum(down, up))        # (n_freqs, n_mels)


def _make_dct(n_mfcc, n_mels):
    # torchaudio.functional.create_dct(n_mfcc, n_mels, norm='ortho')
    n = np.arange(n_mels, dtype=np.float64)
    k = np.arange(n_mfcc, dtype=np.float64)[:, None]
    dct = np.cos(math.pi / n_mels * (n + 0.5) * k)      # (n_mfcc, n_mels)
    dct[0] *= 1.0 / math.sqrt(2.0)
    dct *= math.sqrt(2.0 / n_mels)
    return dct.T                                        # (n_mels, n_mfcc)


def _make_interp_taps(t_in, scale, t_out):
    # F.interpolate(mode='linear', align_corners=False): src = (j+0.5)/s - 0.5
    j = np.arange(t_out, dtype=np.float64)
    src = np.maximum((j + 0.5) / scale - 0.5, 0.0)
    i0 = np.minimum(np.floor(src).astype(np.int64), t_in - 1)
    i1 = np.minimum(i0 + 1, t_in - 1)
    w = (src - i0).astype(np.float32)
    return i0.astype(np.int32), i1.astype(np.int32), w


def build_params(n_mfcc, target_sample_rate, wav_len, compute_dtype=jnp.float32):
    # compute_dtype=jnp.bfloat16 trades some accuracy for much higher MXU rate
    # on the big DFT matmul (v5e/v6e); validate vs the f32 path before using.
    n_mels = max(80, n_mfcc)                            # melkwargs["n_mels"]
    n_mels_pad = _round_up(n_mels, LANE)
    n_mfcc_pad = _round_up(n_mfcc, LANE)

    window = _make_hann(N_FFT)
    cos_m, sin_m = _make_dft(N_FFT, N_FREQ)             # (n_fft, n_freq) each
    dftw = np.zeros((N_FFT_PAD, N_SPEC), np.float64)
    dftw[:N_FFT, :N_FREQ] = window[:, None] * cos_m     # Hann folded in
    dftw[:N_FFT, N_FREQ:2 * N_FREQ] = window[:, None] * sin_m

    fbank = _make_mel_fb(N_FREQ, 0.0, SAMPLING_RATE / 2.0, n_mels, SAMPLING_RATE)
    fb_dup = np.zeros((N_SPEC, n_mels_pad), np.float64)
    fb_dup[:N_FREQ, :n_mels] = fbank                    # re^2 rows
    fb_dup[N_FREQ:2 * N_FREQ, :n_mels] = fbank          # im^2 rows

    dct = _make_dct(n_mfcc, n_mels)                     # (n_mels, n_mfcc)
    dct_pad = np.zeros((n_mels_pad, n_mfcc_pad), np.float64)
    dct_pad[:n_mels, :n_mfcc] = dct

    t_frames = 1 + (wav_len + 2 * (N_FFT // 2) - N_FFT) // HOP
    orig_freq = SAMPLING_RATE // DOWN_SAMPLING_RATE     # 100
    scale = target_sample_rate / orig_freq
    # TODO(synk): 'sinc'/'kaiser' torchaudio Resample modes not implemented;
    # only the 'linear' (F.interpolate, align_corners=False) mode.
    t_out = int(math.floor(t_frames * scale))
    t_out_pad = max(_round_up(t_out, 8), 8)

    i0, i1, w = _make_interp_taps(t_frames, scale, t_out)
    i0p = np.zeros((t_out_pad,), np.int32)
    i1p = np.zeros((t_out_pad,), np.int32)
    wp = np.zeros((t_out_pad,), np.float32)
    i0p[:t_out], i1p[:t_out], wp[:t_out] = i0, i1, w

    return dict(
        dftw=jnp.asarray(dftw, compute_dtype),
        fb=jnp.asarray(fb_dup, jnp.float32),
        dct=jnp.asarray(dct_pad, jnp.float32),
        i0=jnp.asarray(i0p), i1=jnp.asarray(i1p), w=jnp.asarray(wp),
        n_mfcc=n_mfcc, t_frames=t_frames, t_out=t_out,
        compute_dtype=compute_dtype,
    )


# ---------------------------------------------------------------------------
# Pallas kernel: one (batch, time-tile) grid step
# ---------------------------------------------------------------------------
def _mfcc_kernel(frames_ref, dftw_ref, fb_ref, dct_ref, i0_ref, i1_ref, w_ref,
                 out_ref, db_sc, mfcc_sc, peak_sc):
    t = pl.program_id(1)
    nt = pl.num_programs(1)
    tile_t = frames_ref.shape[0]

    @pl.when(t == 0)
    def _init():
        peak_sc[0] = jnp.float32(-1e30)

    # (windowed frames) @ [cos | sin]  -- Hann window is folded into dftw.
    spec = jnp.dot(frames_ref[...], dftw_ref[...],
                   preferred_element_type=jnp.float32)            # (tile_t, 384)
    power = spec * spec
    # fb rows duplicated for re/im halves => mel = re^2 @ fb + im^2 @ fb
    mel = jnp.dot(power, fb_ref[...], preferred_element_type=jnp.float32)
    db = (10.0 * LOG10_INV) * jnp.log(jnp.maximum(mel, AMIN))     # (tile_t, 128)

    # running per-sample peak for the top_db clamp (padded rows/cols give
    # exactly -100 dB and can never exceed the true peak)
    peak_sc[0] = jnp.maximum(peak_sc[0], jnp.max(db))
    row0 = pl.multiple_of(t * tile_t, 8)
    db_sc[pl.ds(row0, tile_t), :] = db

    @pl.when(t == nt - 1)
    def _finalize():
        # amplitude_to_DB top_db clamp: per spectrogram / batch element
        dbc = jnp.maximum(db_sc[...], peak_sc[0] - TOP_DB)
        mfcc_sc[...] = jnp.dot(dbc, dct_ref[...],
                               preferred_element_type=jnp.float32)

        t_out_pad = out_ref.shape[0]

        # Resampler(mode='linear'): 2-tap gather along time (O(t_out) taps)
        def interp_row(j, carry):
            lo = i0_ref[j]
            hi = i1_ref[j]
            wj = w_ref[j]
            out_ref[j] = (1.0 - wj) * mfcc_sc[lo] + wj * mfcc_sc[hi]
            return carry

        lax.fori_loop(0, t_out_pad, interp_row, 0)


def mfcc_encoder_forward(wav, wav_lens, phn, phn_lens, params):
    # wav_lens / phn / phn_lens unused (matches the PyTorch forward semantics)
    del wav_lens, phn, phn_lens
    dftw, fb, dct = params["dftw"], params["fb"], params["dct"]
    i0, i1, w = params["i0"], params["i1"], params["w"]
    n_mfcc, t_out = params["n_mfcc"], params["t_out"]
    compute_dtype = params["compute_dtype"]

    b = wav.shape[0]
    wav = wav.reshape(b, -1).astype(jnp.float32)                  # wav.view(B, -1)
    pad = N_FFT // 2
    padded = jnp.pad(wav, ((0, 0), (pad, pad)), mode="reflect")   # stft center pad
    t_frames = 1 + (padded.shape[1] - N_FFT) // HOP
    assert t_frames == params["t_frames"]

    # Frame without an XLA gather: n_fft = 2*hop + 1, so
    #   frame[t] = chunk[t] ++ chunk[t+1] ++ chunk[t+2][0]
    # TODO(synk): frames still cost ~2x the audio bytes in HBM; in-kernel
    # framing from the raw wav would halve input traffic.
    need = HOP * (t_frames + 2)
    padded = jnp.pad(padded, ((0, 0), (0, need - padded.shape[1])))
    chunks = padded.reshape(b, t_frames + 2, HOP)
    frames = jnp.concatenate(
        [chunks[:, :t_frames], chunks[:, 1:t_frames + 1],
         chunks[:, 2:t_frames + 2, :1]], axis=-1)                 # (B, T, 321)

    # time tiling + zero padding to lane/sublane-friendly shapes
    n_tiles = -(-t_frames // MAX_TILE_T)
    tile_t = _round_up(-(-t_frames // n_tiles), 8)
    t_pad = tile_t * n_tiles
    frames = jnp.pad(frames, ((0, 0), (0, t_pad - t_frames),
                              (0, N_FFT_PAD - N_FFT))).astype(compute_dtype)

    n_mels_pad = fb.shape[1]
    n_mfcc_pad = dct.shape[1]
    t_out_pad = i0.shape[0]

    out = pl.pallas_call(
        _mfcc_kernel,
        out_shape=jax.ShapeDtypeStruct((b, t_out_pad, n_mfcc_pad), jnp.float32),
        grid=(b, n_tiles),
        in_specs=[
            pl.BlockSpec((None, tile_t, N_FFT_PAD), lambda i, t: (i, t, 0)),
            pl.BlockSpec((N_FFT_PAD, N_SPEC), lambda i, t: (0, 0)),
            pl.BlockSpec((N_SPEC, n_mels_pad), lambda i, t: (0, 0)),
            pl.BlockSpec((n_mels_pad, n_mfcc_pad), lambda i, t: (0, 0)),
            pl.BlockSpec(memory_space=pltpu.MemorySpace.SMEM),    # i0 taps
            pl.BlockSpec(memory_space=pltpu.MemorySpace.SMEM),    # i1 taps
            pl.BlockSpec(memory_space=pltpu.MemorySpace.SMEM),    # lerp weights
        ],
        out_specs=pl.BlockSpec((None, t_out_pad, n_mfcc_pad),
                               lambda i, t: (i, 0, 0)),
        scratch_shapes=[
            pltpu.VMEM((t_pad, n_mels_pad), jnp.float32),   # dB, resident over T
            pltpu.VMEM((t_pad, n_mfcc_pad), jnp.float32),   # MFCC (pre-resample)
            pltpu.SMEM((1,), jnp.float32),                  # running top_db peak
        ],
        compiler_params=pltpu.CompilerParams(
            dimension_semantics=("parallel", "arbitrary"),
            vmem_limit_bytes=64 * 1024 * 1024,
        ),
    )(frames, dftw, fb, dct, i0, i1, w)

    # lane-dense (t_out_pad, 128) kernel output -> (B, t_out, n_mfcc)
    return [out[:, :t_out, :n_mfcc]]                              # module returns [enc]


# ---------------------------------------------------------------------------
# float64 numpy reference (torchaudio MFCC + dB + DCT + linear resample)
# ---------------------------------------------------------------------------
def _reference_mfcc(wav_np, n_mfcc, target_sample_rate):
    n_mels = max(80, n_mfcc)
    window = _make_hann(N_FFT)
    cos_m, sin_m = _make_dft(N_FFT, N_FREQ)
    fbank = _make_mel_fb(N_FREQ, 0.0, SAMPLING_RATE / 2.0, n_mels, SAMPLING_RATE)
    dct = _make_dct(n_mfcc, n_mels)

    pad = N_FFT // 2
    padded = np.pad(wav_np.astype(np.float64), ((0, 0), (pad, pad)), mode="reflect")
    t_frames = 1 + (padded.shape[1] - N_FFT) // HOP
    idx = np.arange(t_frames)[:, None] * HOP + np.arange(N_FFT)[None, :]
    frames = padded[:, idx] * window[None, None, :]
    re = frames @ cos_m
    im = frames @ sin_m
    mel = (re * re + im * im) @ fbank
    db = 10.0 * np.log10(np.maximum(mel, AMIN))
    db = np.maximum(db, db.max(axis=(1, 2), keepdims=True) - TOP_DB)
    mfcc = db @ dct                                               # (B, T, n_mfcc)

    scale = target_sample_rate / (SAMPLING_RATE // DOWN_SAMPLING_RATE)
    t_out = int(math.floor(t_frames * scale))
    i0, i1, w = _make_interp_taps(t_frames, scale, t_out)
    w = w.astype(np.float64)[None, :, None]
    return (1.0 - w) * mfcc[:, i0] + w * mfcc[:, i1]


if __name__ == "__main__":
    n_mfcc = 13
    target_sample_rate = 200          # orig = 16000 // 160 = 100 -> scale 2.0
    B, L = 2, 1600                    # 10 frames of hop 160

    key = jax.random.PRNGKey(0)
    wav = jax.random.normal(key, (B, L), dtype=jnp.float32)
    wav_lens = jnp.full((B,), L, dtype=jnp.int32)       # unused by the math
    phn = jnp.zeros((B, 8), dtype=jnp.int32)            # unused by the math
    phn_lens = jnp.full((B,), 8, dtype=jnp.int32)       # unused by the math

    params = build_params(n_mfcc, target_sample_rate, L)
    (enc,) = mfcc_encoder_forward(wav, wav_lens, phn, phn_lens, params)
    jax.block_until_ready(enc)
    assert enc.shape == (B, 20, n_mfcc), enc.shape

    ref = _reference_mfcc(np.asarray(wav), n_mfcc, target_sample_rate)
    err = float(np.max(np.abs(np.asarray(enc, dtype=np.float64) - ref)))
    # loose tolerance: MXU f32 matmul precision differs from f64 numpy
    assert err < 2.0, f"max abs err vs f64 reference: {err}"
    print("KERNEL_OK")
</pallas_src>

<mosaic_0001>
module attributes {stable_mosaic.version = 11 : i64} {
  func.func @_mfcc_kernel(%arg0: i32, %arg1: i32, %arg2: memref<1x16x384xf32, #tpu.memory_space<vmem>>, %arg3: memref<384x384xf32, #tpu.memory_space<vmem>>, %arg4: memref<384x128xf32, #tpu.memory_space<vmem>>, %arg5: memref<128x128xf32, #tpu.memory_space<vmem>>, %arg6: memref<24xi32, #tpu.memory_space<smem>>, %arg7: memref<24xi32, #tpu.memory_space<smem>>, %arg8: memref<24xf32, #tpu.memory_space<smem>>, %arg9: memref<1x24x128xf32, #tpu.memory_space<vmem>>, %arg10: memref<16x128xf32, #tpu.memory_space<vmem>>, %arg11: memref<16x128xf32, #tpu.memory_space<vmem>>, %arg12: memref<1xf32, #tpu.memory_space<smem>>) attributes {dimension_semantics = [#tpu.dimension_semantics<parallel>, #tpu.dimension_semantics<arbitrary>], iteration_bounds = array<i64: 2, 1>, scalar_prefetch = 0 : i64, scratch_operands = 3 : i64, tpu.core_type = #tpu.core_type<tc>, window_params = [{transform_indices = @transform_0, window_bounds = array<i64: 1, 16, 384>}, {pipeline_mode = #tpu.pipeline_mode<synchronous>, transform_indices = @transform_1, window_bounds = array<i64: 384, 384>}, {pipeline_mode = #tpu.pipeline_mode<synchronous>, transform_indices = @transform_2, window_bounds = array<i64: 384, 128>}, {pipeline_mode = #tpu.pipeline_mode<synchronous>, transform_indices = @transform_3, window_bounds = array<i64: 128, 128>}, {transform_indices = @transform_4, window_bounds = array<i64: 24>}, {transform_indices = @transform_5, window_bounds = array<i64: 24>}, {transform_indices = @transform_6, window_bounds = array<i64: 24>}, {transform_indices = @transform_7, window_bounds = array<i64: 1, 24, 128>}]} {
    %c0_i32 = arith.constant 0 : i32
    %0 = arith.cmpi eq, %arg1, %c0_i32 : i32
    %1 = arith.extui %0 : i1 to i32
    %c0_i32_0 = arith.constant 0 : i32
    %2 = arith.cmpi ne, %1, %c0_i32_0 : i32
    scf.if %2 {
      %cst_16 = arith.constant -1.000000e+30 : f32
      %c0_17 = arith.constant 0 : index
      %29 = memref.load %arg12[%c0_17] : memref<1xf32, #tpu.memory_space<smem>>
      memref.store %cst_16, %arg12[%c0_17] : memref<1xf32, #tpu.memory_space<smem>>
    } else {
    }
    %c0 = arith.constant 0 : index
    %c0_1 = arith.constant 0 : index
    %c0_2 = arith.constant 0 : index
    %3 = vector.load %arg2[%c0, %c0_1, %c0_2] : memref<1x16x384xf32, #tpu.memory_space<vmem>>, vector<1x16x384xf32>
    %4 = vector.shape_cast %3 : vector<1x16x384xf32> to vector<16x384xf32>
    %c0_3 = arith.constant 0 : index
    %c0_4 = arith.constant 0 : index
    %5 = vector.load %arg3[%c0_3, %c0_4] : memref<384x384xf32, #tpu.memory_space<vmem>>, vector<384x384xf32>
    %cst = arith.constant dense<0.000000e+00> : vector<16x384xf32>
    %6 = tpu.matmul %4, %5, %cst {dimension_numbers = #tpu.dot_dimension_numbers<[1], [0], [0], [1], [0, 0, 1, 1], [], []>} : vector<16x384xf32>, vector<384x384xf32>, vector<16x384xf32> -> vector<16x384xf32>
    %7 = arith.mulf %6, %6 : vector<16x384xf32>
    %c0_5 = arith.constant 0 : index
    %c0_6 = arith.constant 0 : index
    %8 = vector.load %arg4[%c0_5, %c0_6] : memref<384x128xf32, #tpu.memory_space<vmem>>, vector<384x128xf32>
    %cst_7 = arith.constant dense<0.000000e+00> : vector<16x128xf32>
    %9 = tpu.matmul %7, %8, %cst_7 {dimension_numbers = #tpu.dot_dimension_numbers<[1], [0], [0], [1], [0, 0, 1, 1], [], []>} : vector<16x384xf32>, vector<384x128xf32>, vector<16x128xf32> -> vector<16x128xf32>
    %cst_8 = arith.constant 1.000000e-10 : f32
    %10 = vector.broadcast %cst_8 : f32 to vector<16x128xf32>
    %11 = arith.maximumf %9, %10 : vector<16x128xf32>
    %12 = math.log %11 : vector<16x128xf32>
    %cst_9 = arith.constant 4.34294462 : f32
    %13 = vector.broadcast %cst_9 : f32 to vector<16x128xf32>
    %14 = arith.mulf %13, %12 : vector<16x128xf32>
    %c0_10 = arith.constant 0 : index
    %15 = memref.load %arg12[%c0_10] : memref<1xf32, #tpu.memory_space<smem>>
    %16 = vector.shape_cast %14 : vector<16x128xf32> to vector<1x16x128xf32>
    %cst_11 = arith.constant dense<0xFF800000> : vector<1xf32>
    %17 = vector.multi_reduction <maximumf>, %16, %cst_11 [1, 2] : vector<1x16x128xf32> to vector<1xf32>
    %18 = vector.shape_cast %17 : vector<1xf32> to vector<1x1x1xf32>
    %19 = vector.extract %18[0, 0, 0] : f32 from vector<1x1x1xf32>
    %20 = arith.maximumf %15, %19 : f32
    %c0_12 = arith.constant 0 : index
    %21 = memref.load %arg12[%c0_12] : memref<1xf32, #tpu.memory_space<smem>>
    memref.store %20, %arg12[%c0_12] : memref<1xf32, #tpu.memory_space<smem>>
    %c16_i32 = arith.constant 16 : i32
    %22 = arith.muli %arg1, %c16_i32 : i32
    %23 = tpu.assume_multiple %22, 8 : i32
    %24 = arith.index_cast %23 : i32 to index
    %c0_13 = arith.constant 0 : index
    %25 = vector.load %arg10[%24, %c0_13] : memref<16x128xf32, #tpu.memory_space<vmem>>, vector<16x128xf32>
    tpu.vector_store %arg10[%24, %c0_13], %14 {strides = array<i32>} : memref<16x128xf32, #tpu.memory_space<vmem>>, vector<16x128xf32>,
    %c0_i32_14 = arith.constant 0 : i32
    %26 = arith.cmpi eq, %arg1, %c0_i32_14 : i32
    %27 = arith.extui %26 : i1 to i32
    %c0_i32_15 = arith.constant 0 : i32
    %28 = arith.cmpi ne, %27, %c0_i32_15 : i32
    scf.if %28 {
      %c0_16 = arith.constant 0 : index
      %c0_17 = arith.constant 0 : index
      %29 = vector.load %arg10[%c0_16, %c0_17] : memref<16x128xf32, #tpu.memory_space<vmem>>, vector<16x128xf32>
      %c0_18 = arith.constant 0 : index
      %30 = memref.load %arg12[%c0_18] : memref<1xf32, #tpu.memory_space<smem>>
      %cst_19 = arith.constant 8.000000e+01 : f32
      %31 = arith.subf %30, %cst_19 : f32
      %32 = vector.broadcast %31 : f32 to vector<16x128xf32>
      %33 = arith.maximumf %29, %32 : vector<16x128xf32>
      %c0_20 = arith.constant 0 : index
      %c0_21 = arith.constant 0 : index
      %34 = vector.load %arg5[%c0_20, %c0_21] : memref<128x128xf32, #tpu.memory_space<vmem>>, vector<128x128xf32>
      %cst_22 = arith.constant dense<0.000000e+00> : vector<16x128xf32>
      %35 = tpu.matmul %33, %34, %cst_22 {dimension_numbers = #tpu.dot_dimension_numbers<[1], [0], [0], [1], [0, 0, 1, 1], [], []>} : vector<16x128xf32>, vector<128x128xf32>, vector<16x128xf32> -> vector<16x128xf32>
      %c0_23 = arith.constant 0 : index
      %c0_24 = arith.constant 0 : index
      %36 = vector.load %arg11[%c0_23, %c0_24] : memref<16x128xf32, #tpu.memory_space<vmem>>, vector<16x128xf32>
      tpu.vector_store %arg11[%c0_23, %c0_24], %35 {strides = array<i32>} : memref<16x128xf32, #tpu.memory_space<vmem>>, vector<16x128xf32>,
      %c0_i32_25 = arith.constant 0 : i32
      %c24_i32 = arith.constant 24 : i32
      %37 = arith.addi %c0_i32_25, %c24_i32 : i32
      %c1_i32 = arith.constant 1 : i32
      scf.for %arg13 = %c0_i32_25 to %37 step %c1_i32  : i32 {
        %38 = arith.index_cast %arg13 : i32 to index
        %39 = memref.load %arg6[%38] : memref<24xi32, #tpu.memory_space<smem>>
        %40 = arith.index_cast %arg13 : i32 to index
        %41 = memref.load %arg7[%40] : memref<24xi32, #tpu.memory_space<smem>>
        %42 = arith.index_cast %arg13 : i32 to index
        %43 = memref.load %arg8[%42] : memref<24xf32, #tpu.memory_space<smem>>
        %cst_27 = arith.constant 1.000000e+00 : f32
        %44 = arith.subf %cst_27, %43 : f32
        %45 = arith.index_cast %39 : i32 to index
        %c0_28 = arith.constant 0 : index
        %46 = vector.load %arg11[%45, %c0_28] : memref<16x128xf32, #tpu.memory_space<vmem>>, vector<1x128xf32>
        %47 = vector.shape_cast %46 : vector<1x128xf32> to vector<128xf32>
        %48 = vector.broadcast %44 : f32 to vector<128xf32>
        %49 = arith.mulf %48, %47 : vector<128xf32>
        %50 = arith.index_cast %41 : i32 to index
        %c0_29 = arith.constant 0 : index
        %51 = vector.load %arg11[%50, %c0_29] : memref<16x128xf32, #tpu.memory_space<vmem>>, vector<1x128xf32>
        %52 = vector.shape_cast %51 : vector<1x128xf32> to vector<128xf32>
        %53 = vector.broadcast %43 : f32 to vector<128xf32>
        %54 = arith.mulf %53, %52 : vector<128xf32>
        %55 = arith.addf %49, %54 : vector<128xf32>
        %c0_30 = arith.constant 0 : index
        %56 = arith.index_cast %arg13 : i32 to index
        %c0_31 = arith.constant 0 : index
        %57 = vector.load %arg9[%c0_30, %56, %c0_31] : memref<1x24x128xf32, #tpu.memory_space<vmem>>, vector<1x1x128xf32>
        %58 = vector.shape_cast %57 : vector<1x1x128xf32> to vector<128xf32>
        %59 = vector.shape_cast %55 : vector<128xf32> to vector<1x1x128xf32>
        tpu.vector_store %arg9[%c0_30, %56, %c0_31], %59 {strides = array<i32>} : memref<1x24x128xf32, #tpu.memory_space<vmem>>, vector<1x1x128xf32>,
      }
      %c24_i32_26 = arith.constant 24 : i32
    } else {
    }
    return
  }
  func.func @transform_0(%arg0: i32, %arg1: i32) -> (i32, i32, i32) {
    %c0_i32 = arith.constant 0 : i32
    %c0_i32_0 = arith.constant 0 : i32
    return %arg0, %arg1, %c0_i32 : i32, i32, i32
  }
  func.func @transform_1(%arg0: i32, %arg1: i32) -> (i32, i32) {
    %c0_i32 = arith.constant 0 : i32
    %c0_i32_0 = arith.constant 0 : i32
    %c0_i32_1 = arith.constant 0 : i32
    return %c0_i32, %c0_i32_0 : i32, i32
  }
  func.func @transform_2(%arg0: i32, %arg1: i32) -> (i32, i32) {
    %c0_i32 = arith.constant 0 : i32
    %c0_i32_0 = arith.constant 0 : i32
    %c0_i32_1 = arith.constant 0 : i32
    return %c0_i32, %c0_i32_0 : i32, i32
  }
  func.func @transform_3(%arg0: i32, %arg1: i32) -> (i32, i32) {
    %c0_i32 = arith.constant 0 : i32
    %c0_i32_0 = arith.constant 0 : i32
    %c0_i32_1 = arith.constant 0 : i32
    return %c0_i32, %c0_i32_0 : i32, i32
  }
  func.func @transform_4(%arg0: i32, %arg1: i32) -> i32 {
    %c0_i32 = arith.constant 0 : i32
    %c0_i32_0 = arith.constant 0 : i32
    return %c0_i32 : i32
  }
  func.func @transform_5(%arg0: i32, %arg1: i32) -> i32 {
    %c0_i32 = arith.constant 0 : i32
    %c0_i32_0 = arith.constant 0 : i32
    return %c0_i32 : i32
  }
  func.func @transform_6(%arg0: i32, %arg1: i32) -> i32 {
    %c0_i32 = arith.constant 0 : i32
    %c0_i32_0 = arith.constant 0 : i32
    return %c0_i32 : i32
  }
  func.func @transform_7(%arg0: i32, %arg1: i32) -> (i32, i32, i32) {
    %c0_i32 = arith.constant 0 : i32
    %c0_i32_0 = arith.constant 0 : i32
    %c0_i32_1 = arith.constant 0 : i32
    return %arg0, %c0_i32, %c0_i32_0 : i32, i32, i32
  }
}

</mosaic_0001>

<llo_original>
// kernel: tpu_custom_call.1
$region0: #{tpu_custom_call.1}
  #allocation0 [shape = 'u32[]', space=smem, size = 0x4, offset = 0x4, fixed_abs, tag = 'smem constant byte address 0x4 - core index']
  #allocation1 [shape = 'u32[144,128]{1,0:T(1,128)}', space=vmem, size = 0x12000, scoped, tag = 'internal scratch']
  #allocation2 [shape = 'f32[16,128]{1,0:T(8,128)}', space=vmem, size = 0x2000, scoped, tag = 'scratch operand']
  #allocation3 [shape = 'f32[16,128]{1,0:T(8,128)}', space=vmem, size = 0x2000, scoped, tag = 'scratch operand']
  #allocation4 [shape = 'f32[1]{0:T(128)}', space=smem, size = 0x200, scoped, tag = 'scratch operand']
  %s0 = inlined_call_operand.hbm [shape: f32[2,16,384], index: 0, kind: input, shape index: {}]
  %s1 = inlined_call_operand.hbm [shape: f32[384,384], index: 1, kind: input, shape index: {}]
  %s2 = inlined_call_operand.hbm [shape: f32[384,128], index: 2, kind: input, shape index: {}]
  %s3 = inlined_call_operand.hbm [shape: f32[128,128], index: 3, kind: input, shape index: {}]
  %s4 = inlined_call_operand.vmem [shape: s32[24], index: 4, kind: input, shape index: {}]
  %s5 = inlined_call_operand.vmem [shape: s32[24], index: 5, kind: input, shape index: {}]
  %s6 = inlined_call_operand.vmem [shape: f32[24], index: 6, kind: input, shape index: {}]
  %s7 = inlined_call_operand.hbm [shape: f32[2,24,128], index: 7, kind: output, shape index: {}]
  %s8 = sld [smem:[#allocation0]]
  $region104: #{tpu_custom_call.1} parent=0
    _
  %s10 = ssub.s32 1, %s8
  %s11 = scalar_select 0, %s10, %s8
  $region1: #{tpu_custom_call.1} parent=0
    #allocation5 [shape = 'u8[49152]{0}', space=vmem, size = 0xc000, scoped, tag = 'input window, operand 0']
    #allocation6 [shape = 's32[2]{0}', space=sflag, size = 0x8, scoped, tag = 'scoped memory for tpu_custom_call.1']
    #allocation7 [shape = 's32[2]{0}', space=sflag, size = 0x8, scoped, tag = 'scoped memory for tpu_custom_call.1']
    #allocation8 [shape = 's32[2]{0}', space=sflag, size = 0x8, scoped, tag = 'scoped memory for tpu_custom_call.1']
    #allocation9 [shape = 'u8[589824]{0}', space=vmem, size = 0x90000, scoped, tag = 'input window, operand 1, single buffered']
    #allocation10 [shape = 's32[1]{0}', space=sflag, size = 0x4, scoped, tag = 'scoped memory for tpu_custom_call.1']
    #allocation11 [shape = 'u8[196608]{0}', space=vmem, size = 0x30000, scoped, tag = 'input window, operand 2, single buffered']
    #allocation12 [shape = 'u8[65536]{0}', space=vmem, size = 0x10000, scoped, tag = 'input window, operand 3, single buffered']
    #allocation13 [shape = 's32[1]{0}', space=sflag, size = 0x4, scoped, tag = 'scoped memory for tpu_custom_call.1']
    #allocation14 [shape = 'u8[512]{0}', space=smem, size = 0x200, scoped, tag = 'input window, operand 4, single buffered']
    #allocation15 [shape = 'u8[512]{0}', space=smem, size = 0x200, scoped, tag = 'input window, operand 5, single buffered']
    #allocation16 [shape = 's32[1]{0}', space=sflag, size = 0x4, scoped, tag = 'scoped memory for tpu_custom_call.1']
    #allocation17 [shape = 'u8[512]{0}', space=smem, size = 0x200, scoped, tag = 'input window, operand 6, single buffered']
    #allocation18 [shape = 'u8[24576]{0}', space=vmem, size = 0x6000, scoped, tag = 'output window, operand 0']
    %12 = vsyncpa [#allocation6], 0
    %s13 = scalar_lea.sflag [#allocation6], 1
    %14 = vsyncpa %s13, 0
    %15 = vsyncpa [#allocation10], 0
    %16 = vsyncpa [#allocation13], 0
    %17 = vsyncpa [#allocation8], 0
    %18 = vsyncpa [#allocation16], 0
    %19 = vsyncpa [#allocation7], 0
    %s20 = scalar_lea.sflag [#allocation7], 1
    %21 = vsyncpa %s20, 0
    loop: start=0, step=1, limit=4
    $region2: #{tpu_custom_call.1} parent=1 // loop_pre_header
      _
    $region3: #{tpu_custom_call.1} parent=1 // loop_header
      %s23 = sphi 0, %s27
      %p24 = scmp.ge.s32.totalorder %s23, 4
      %s30 = sphi 0, %s42
      %s31 = sphi 0, %s38
      %s32 = sphi 0, %s30
      %s33 = sphi 0, %s31
      %s34 = sphi 0, %s32
      %s35 = sphi 0, %s33
      %s47 = sphi 0, %s49
      %s50 = sphi 0, %s47
      %s51 = sphi 0, %s50
      %s67 = sphi 0, %s51
      %s71 = sphi 0, %s71
      %s73 = sphi 0, %s71
      %s74 = sphi 0, %s73
      %s88 = sphi 0, %s74
      %s92 = sphi 0, %s92
      %s94 = sphi 0, %s92
      %s95 = sphi 0, %s94
      %s109 = sphi 0, %s95
      %s113 = sphi 0, %s113
      %s115 = sphi 0, %s113
      %s116 = sphi 0, %s115
      %s130 = sphi 0, %s116
      %s134 = sphi 0, %s134
      %s136 = sphi 0, %s134
      %s137 = sphi 0, %s136
      %s151 = sphi 0, %s137
      %s155 = sphi 0, %s155
      %s157 = sphi 0, %s155
      %s158 = sphi 0, %s157
      %s172 = sphi 0, %s158
      %s176 = sphi 0, %s176
      %s178 = sphi 0, %s176
      %s179 = sphi 0, %s178
      %s193 = sphi 0, %s179
      %s199 = sphi 0, %s201
      %s202 = sphi 0, %s199
      %s203 = sphi 0, %s202
      %s219 = sphi 0, %s203
    $region4: #{tpu_custom_call.1} parent=1 // loop_header_branch
      %26 = sbr.rel (%p24) target = $region8
    $region5: #{tpu_custom_call.1} parent=1 // loop_body
      %s28 = ssub.s32 %s23, 1
      %s29 = ssub.s32 %s23, 2
      %s36 = sadd.s32 1, %s31
      %p37 = scmp.ge.s32.totalorder %s36, 1
      %s38 = scalar_select %p37, 0, %s36
      %s39 = sadd.s32 1, %s30
      %s40 = scalar_select %p37, %s39, %s30
      %p41 = scmp.ge.s32.totalorder %s40, 2
      %s42 = scalar_select %p41, 0, %s40
      %s43 = ssub.s32 %s30, %s42
      %s44 = ssub.s32 %s31, %s38
      %s45 = sor.u32 %s43, %s44
      %p46 = scmp.eq.s32.totalorder %s45, 0
      %s48 = sadd.s32 %s47, 1
      %s49 = scalar_select %p46, %s47, %s48
      %p52 = pneg %p46
      %p53 = scmp.eq.s32.totalorder %s23, 1
      %p54 = por %p52, %p53
      %p55 = scmp.ne.s32.totalorder %s47, %s50
      %p56 = scmp.eq.s32.totalorder %s23, 0
      %p57 = por %p55, %p56
      %p58 = scmp.ne.s32.totalorder %s47, %s50
      %p59 = scmp.eq.s32.totalorder %s28, 1
      %p60 = por %p58, %p59
      %p61 = scmp.ne.s32.totalorder %s50, %s51
      %p62 = scmp.eq.s32.totalorder %s28, 0
      %p63 = por %p61, %p62
      %p64 = scmp.ne.s32.totalorder %s50, %s51
      %p65 = scmp.eq.s32.totalorder %s29, 1
      %p66 = por %p64, %p65
      %p68 = scmp.ne.s32.totalorder %s51, %s67
      %p69 = scmp.eq.s32.totalorder %s29, 0
      %p70 = por %p68, %p69
      %s72 = sadd.s32 %s71, 1
      %p75 = scmp.eq.s32.totalorder %s23, 1
      %p76 = scmp.ne.s32.totalorder %s71, %s73
      %p77 = scmp.eq.s32.totalorder %s23, 0
      %p78 = por %p76, %p77
      %p79 = scmp.ne.s32.totalorder %s71, %s73
      %p80 = scmp.eq.s32.totalorder %s28, 1
      %p81 = por %p79, %p80
      %p82 = scmp.ne.s32.totalorder %s73, %s74
      %p83 = scmp.eq.s32.totalorder %s28, 0
      %p84 = por %p82, %p83
      %p85 = scmp.ne.s32.totalorder %s73, %s74
      %p86 = scmp.eq.s32.totalorder %s29, 1
      %p87 = por %p85, %p86
      %p89 = scmp.ne.s32.totalorder %s74, %s88
      %p90 = scmp.eq.s32.totalorder %s29, 0
      %p91 = por %p89, %p90
      %s93 = sadd.s32 %s92, 1
      %p96 = scmp.eq.s32.totalorder %s23, 1
      %p97 = scmp.ne.s32.totalorder %s92, %s94
      %p98 = scmp.eq.s32.totalorder %s23, 0
      %p99 = por %p97, %p98
      %p100 = scmp.ne.s32.totalorder %s92, %s94
      %p101 = scmp.eq.s32.totalorder %s28, 1
      %p102 = por %p100, %p101
      %p103 = scmp.ne.s32.totalorder %s94, %s95
      %p104 = scmp.eq.s32.totalorder %s28, 0
      %p105 = por %p103, %p104
      %p106 = scmp.ne.s32.totalorder %s94, %s95
      %p107 = scmp.eq.s32.totalorder %s29, 1
      %p108 = por %p106, %p107
      %p110 = scmp.ne.s32.totalorder %s95, %s109
      %p111 = scmp.eq.s32.totalorder %s29, 0
      %p112 = por %p110, %p111
      %s114 = sadd.s32 %s113, 1
      %p117 = scmp.eq.s32.totalorder %s23, 1
      %p118 = scmp.ne.s32.totalorder %s113, %s115
      %p119 = scmp.eq.s32.totalorder %s23, 0
      %p120 = por %p118, %p119
      %p121 = scmp.ne.s32.totalorder %s113, %s115
      %p122 = scmp.eq.s32.totalorder %s28, 1
      %p123 = por %p121, %p122
      %p124 = scmp.ne.s32.totalorder %s115, %s116
      %p125 = scmp.eq.s32.totalorder %s28, 0
      %p126 = por %p124, %p125
      %p127 = scmp.ne.s32.totalorder %s115, %s116
      %p128 = scmp.eq.s32.totalorder %s29, 1
      %p129 = por %p127, %p128
      %p131 = scmp.ne.s32.totalorder %s116, %s130
      %p132 = scmp.eq.s32.totalorder %s29, 0
      %p133 = por %p131, %p132
      %s135 = sadd.s32 %s134, 1
      %p138 = scmp.eq.s32.totalorder %s23, 1
      %p139 = scmp.ne.s32.totalorder %s134, %s136
      %p140 = scmp.eq.s32.totalorder %s23, 0
      %p141 = por %p139, %p140
      %p142 = scmp.ne.s32.totalorder %s134, %s136
      %p143 = scmp.eq.s32.totalorder %s28, 1
      %p144 = por %p142, %p143
      %p145 = scmp.ne.s32.totalorder %s136, %s137
      %p146 = scmp.eq.s32.totalorder %s28, 0
      %p147 = por %p145, %p146
      %p148 = scmp.ne.s32.totalorder %s136, %s137
      %p149 = scmp.eq.s32.totalorder %s29, 1
      %p150 = por %p148, %p149
      %p152 = scmp.ne.s32.totalorder %s137, %s151
      %p153 = scmp.eq.s32.totalorder %s29, 0
      %p154 = por %p152, %p153
      %s156 = sadd.s32 %s155, 1
      %p159 = scmp.eq.s32.totalorder %s23, 1
      %p160 = scmp.ne.s32.totalorder %s155, %s157
      %p161 = scmp.eq.s32.totalorder %s23, 0
      %p162 = por %p160, %p161
      %p163 = scmp.ne.s32.totalorder %s155, %s157
      %p164 = scmp.eq.s32.totalorder %s28, 1
      %p165 = por %p163, %p164
      %p166 = scmp.ne.s32.totalorder %s157, %s158
      %p167 = scmp.eq.s32.totalorder %s28, 0
      %p168 = por %p166, %p167
      %p169 = scmp.ne.s32.totalorder %s157, %s158
      %p170 = scmp.eq.s32.totalorder %s29, 1
      %p171 = por %p169, %p170
      %p173 = scmp.ne.s32.totalorder %s158, %s172
      %p174 = scmp.eq.s32.totalorder %s29, 0
      %p175 = por %p173, %p174
      %s177 = sadd.s32 %s176, 1
      %p180 = scmp.eq.s32.totalorder %s23, 1
      %p181 = scmp.ne.s32.totalorder %s176, %s178
      %p182 = scmp.eq.s32.totalorder %s23, 0
      %p183 = por %p181, %p182
      %p184 = scmp.ne.s32.totalorder %s176, %s178
      %p185 = scmp.eq.s32.totalorder %s28, 1
      %p186 = por %p184, %p185
      %p187 = scmp.ne.s32.totalorder %s178, %s179
      %p188 = scmp.eq.s32.totalorder %s28, 0
      %p189 = por %p187, %p188
      %p190 = scmp.ne.s32.totalorder %s178, %s179
      %p191 = scmp.eq.s32.totalorder %s29, 1
      %p192 = por %p190, %p191
      %p194 = scmp.ne.s32.totalorder %s179, %s193
      %p195 = scmp.eq.s32.totalorder %s29, 0
      %p196 = por %p194, %p195
      %s197 = ssub.s32 %s30, %s42
      %p198 = scmp.eq.s32.totalorder %s197, 0
      %s200 = sadd.s32 %s199, 1
      %s201 = scalar_select %p198, %s199, %s200
      %p204 = pneg %p198
      %p205 = scmp.eq.s32.totalorder %s23, 1
      %p206 = por %p204, %p205
      %p207 = scmp.ne.s32.totalorder %s199, %s202
      %p208 = scmp.eq.s32.totalorder %s23, 0
      %p209 = por %p207, %p208
      %p210 = scmp.ne.s32.totalorder %s199, %s202
      %p211 = scmp.eq.s32.totalorder %s28, 1
      %p212 = por %p210, %p211
      %p213 = scmp.ne.s32.totalorder %s202, %s203
      %p214 = scmp.eq.s32.totalorder %s28, 0
      %p215 = por %p213, %p214
      %p216 = scmp.ne.s32.totalorder %s202, %s203
      %p217 = scmp.eq.s32.totalorder %s29, 1
      %p218 = por %p216, %p217
      %p220 = scmp.ne.s32.totalorder %s203, %s219
      %p221 = scmp.eq.s32.totalorder %s29, 0
      %p222 = por %p220, %p221
      %p223 = scmp.le.s32.totalorder 1, %s23
      %p224 = scmp.lt.s32.totalorder %s23, 3
      %p225 = pnand %p223, %p224
      %p226 = pneg %p225
      // Predicated region
      $region9: #{tpu_custom_call.1} parent=5 // pred_check
        _
      $region10: #{tpu_custom_call.1} parent=5 // pred_check_branch
        %228 = sbr.rel (%p225) target = $region12
      $region11: #{tpu_custom_call.1} parent=5 // pred_region
        %s229 = ssub.s32 %s23, 1
        // Predicated region
        $region13: #{tpu_custom_call.1} parent=11 // pred_check
          %p230 = pneg %p84
        $region14: #{tpu_custom_call.1} parent=11 // pred_check_branch
          %232 = sbr.rel (%p230) target = $region16
        $region15: #{tpu_custom_call.1} parent=11 // pred_region
          %s234 = ssub.s32 18432, 18432
          %235 = vsyncadd [#allocation10], %s234
          %s236 = sshll.u32 [#allocation9], 4
          %s237 = int_to_ptr.vmem [resolvable:$true] %s236
          %242 = dma.hbm_to_vmem [thread:$0]  %s1, 18432, %s237, [#allocation10], 384, 384, 24
        $region16: #{tpu_custom_call.1} parent=11 // pred_fallthru
          _
        // Predicated region
        $region17: #{tpu_custom_call.1} parent=11 // pred_check
          %p243 = pneg %p105
        $region18: #{tpu_custom_call.1} parent=11 // pred_check_branch
          %245 = sbr.rel (%p243) target = $region20
        $region19: #{tpu_custom_call.1} parent=11 // pred_region
          %s247 = ssub.s32 6144, 6144
          %248 = vsyncadd [#allocation10], %s247
          %s249 = sshll.u32 [#allocation11], 4
          %s250 = int_to_ptr.vmem [resolvable:$true] %s249
          %255 = dma.hbm_to_vmem [thread:$0]  %s2, 6144, %s250, [#allocation10], 128, 128, 8
        $region20: #{tpu_custom_call.1} parent=11 // pred_fallthru
          _
        // Predicated region
        $region21: #{tpu_custom_call.1} parent=11 // pred_check
          %p256 = pneg %p126
        $region22: #{tpu_custom_call.1} parent=11 // pred_check_branch
          %258 = sbr.rel (%p256) target = $region24
        $region23: #{tpu_custom_call.1} parent=11 // pred_region
          %s260 = ssub.s32 2048, 2048
          %261 = vsyncadd [#allocation13], %s260
          %s262 = sshll.u32 [#allocation12], 4
          %s263 = int_to_ptr.vmem [resolvable:$true] %s262
          %268 = dma.hbm_to_vmem [thread:$0]  %s3, 2048, %s263, [#allocation13], 128, 128, 8
        $region24: #{tpu_custom_call.1} parent=11 // pred_fallthru
          _
        // Predicated region
        $region25: #{tpu_custom_call.1} parent=11 // pred_check
          %p269 = pneg %p147
        $region26: #{tpu_custom_call.1} parent=11 // pred_check_branch
          %271 = sbr.rel (%p269) target = $region28
        $region27: #{tpu_custom_call.1} parent=11 // pred_region
          %s273 = ssub.s32 16, 16
          %274 = vsyncadd [#allocation8], %s273
          %s276 = sshll.u32 %s4, 4
          %s277 = int_to_ptr.vmem [resolvable:$true] %s276
          %279 = dma.vmem_to_smem %s277, 16, [#allocation14], [#allocation8]
        $region28: #{tpu_custom_call.1} parent=11 // pred_fallthru
          _
        // Predicated region
        $region29: #{tpu_custom_call.1} parent=11 // pred_check
          %p280 = pneg %p168
        $region30: #{tpu_custom_call.1} parent=11 // pred_check_branch
          %282 = sbr.rel (%p280) target = $region32
        $region31: #{tpu_custom_call.1} parent=11 // pred_region
          %s284 = ssub.s32 16, 16
          %285 = vsyncadd [#allocation16], %s284
          %s287 = sshll.u32 %s5, 4
          %s288 = int_to_ptr.vmem [resolvable:$true] %s287
          %290 = dma.vmem_to_smem %s288, 16, [#allocation15], [#allocation16]
        $region32: #{tpu_custom_call.1} parent=11 // pred_fallthru
          _
        // Predicated region
        $region33: #{tpu_custom_call.1} parent=11 // pred_check
          %p291 = pneg %p189
        $region34: #{tpu_custom_call.1} parent=11 // pred_check_branch
          %293 = sbr.rel (%p291) target = $region36
        $region35: #{tpu_custom_call.1} parent=11 // pred_region
          %s295 = ssub.s32 16, 16
          %296 = vsyncadd [#allocation16], %s295
          %s298 = sshll.u32 %s6, 4
          %s299 = int_to_ptr.vmem [resolvable:$true] %s298
          %301 = dma.vmem_to_smem %s299, 16, [#allocation17], [#allocation16]
        $region36: #{tpu_custom_call.1} parent=11 // pred_fallthru
          _
      $region12: #{tpu_custom_call.1} parent=5 // pred_fallthru
        _
      %p302 = scmp.lt.s32.totalorder %s23, 2
      // Predicated region
      $region37: #{tpu_custom_call.1} parent=5 // pred_check
        %p303 = pneg %p302
      $region38: #{tpu_custom_call.1} parent=5 // pred_check_branch
        %305 = sbr.rel (%p303) target = $region40
      $region39: #{tpu_custom_call.1} parent=5 // pred_region
        // Predicated region
        $region41: #{tpu_custom_call.1} parent=39 // pred_check
          %p306 = pneg %p57
        $region42: #{tpu_custom_call.1} parent=39 // pred_check_branch
          %308 = sbr.rel (%p306) target = $region44
        $region43: #{tpu_custom_call.1} parent=39 // pred_region
          %s309 = sand.u32 %s47, 1
          %s310 = scalar_lea.sflag [#allocation6], %s309
          %s311 = sand.u32 %s47, 1
          %s312 = smul.addr %s311, 48
          %s313 = scalar_lea.vmem [#allocation5], %s312
          %s314 = smul.u32 2, %s31
          %s316 = ssub.s32 768, 768
          %317 = vsyncadd %s310, %s316
          %s318 = smul.addr %s314, 3
          %s319 = smul.addr %s30, 6
          %s320 = sadd.s32 %s318, %s319
          %s321 = smul.addr %s320, 128
          %s322 = scalar_lea.hbm %s0, %s321
          %s323 = sshll.u32 %s313, 4
          %s324 = int_to_ptr.vmem [resolvable:$true] %s323
          %329 = dma.hbm_to_vmem [thread:$0]  %s322, 768, %s324, %s310, 384, 384, 24
        $region44: #{tpu_custom_call.1} parent=39 // pred_fallthru
          _
      $region40: #{tpu_custom_call.1} parent=5 // pred_fallthru
        _
      %p330 = scmp.le.s32.totalorder 1, %s23
      %p331 = scmp.lt.s32.totalorder %s23, 3
      %p332 = pnand %p330, %p331
      %p333 = pneg %p332
      // Predicated region
      $region45: #{tpu_custom_call.1} parent=5 // pred_check
        _
      $region46: #{tpu_custom_call.1} parent=5 // pred_check_branch
        %335 = sbr.rel (%p332) target = $region48
      $region47: #{tpu_custom_call.1} parent=5 // pred_region
        %s336 = ssub.s32 %s23, 1
        %s337 = sand.u32 %s50, 1
        %s338 = scalar_lea.sflag [#allocation6], %s337
        %s339 = sand.u32 %s50, 1
        %s340 = smul.addr %s339, 48
        %s341 = scalar_lea.vmem [#allocation5], %s340
        // Predicated region
        $region49: #{tpu_custom_call.1} parent=47 // pred_check
          %p342 = pneg %p63
        $region50: #{tpu_custom_call.1} parent=47 // pred_check_branch
          %344 = sbr.rel (%p342) target = $region52
        $region51: #{tpu_custom_call.1} parent=47 // pred_region
          %345 = dma.done %s338, 768
        $region52: #{tpu_custom_call.1} parent=47 // pred_fallthru
          _
        // Predicated region
        $region53: #{tpu_custom_call.1} parent=47 // pred_check
          %p346 = pneg %p84
        $region54: #{tpu_custom_call.1} parent=47 // pred_check_branch
          %348 = sbr.rel (%p346) target = $region56
        $region55: #{tpu_custom_call.1} parent=47 // pred_region
          %349 = dma.done [#allocation10], 18432
        $region56: #{tpu_custom_call.1} parent=47 // pred_fallthru
          _
        // Predicated region
        $region57: #{tpu_custom_call.1} parent=47 // pred_check
          %p350 = pneg %p105
        $region58: #{tpu_custom_call.1} parent=47 // pred_check_branch
          %352 = sbr.rel (%p350) target = $region60
        $region59: #{tpu_custom_call.1} parent=47 // pred_region
          %353 = dma.done [#allocation10], 6144
        $region60: #{tpu_custom_call.1} parent=47 // pred_fallthru
          _
        // Predicated region
        $region61: #{tpu_custom_call.1} parent=47 // pred_check
          %p354 = pneg %p126
        $region62: #{tpu_custom_call.1} parent=47 // pred_check_branch
          %356 = sbr.rel (%p354) target = $region64
        $region63: #{tpu_custom_call.1} parent=47 // pred_region
          %357 = dma.done [#allocation13], 2048
        $region64: #{tpu_custom_call.1} parent=47 // pred_fallthru
          _
        // Predicated region
        $region65: #{tpu_custom_call.1} parent=47 // pred_check
          %p358 = pneg %p147
        $region66: #{tpu_custom_call.1} parent=47 // pred_check_branch
          %360 = sbr.rel (%p358) target = $region68
        $region67: #{tpu_custom_call.1} parent=47 // pred_region
          %361 = dma.done [#allocation8], 16
        $region68: #{tpu_custom_call.1} parent=47 // pred_fallthru
          _
        // Predicated region
        $region69: #{tpu_custom_call.1} parent=47 // pred_check
          %p362 = pneg %p168
        $region70: #{tpu_custom_call.1} parent=47 // pred_check_branch
          %364 = sbr.rel (%p362) target = $region72
        $region71: #{tpu_custom_call.1} parent=47 // pred_region
          %365 = dma.done [#allocation16], 16
        $region72: #{tpu_custom_call.1} parent=47 // pred_fallthru
          _
        // Predicated region
        $region73: #{tpu_custom_call.1} parent=47 // pred_check
          %p366 = pneg %p189
        $region74: #{tpu_custom_call.1} parent=47 // pred_check_branch
          %368 = sbr.rel (%p366) target = $region76
        $region75: #{tpu_custom_call.1} parent=47 // pred_region
          %369 = dma.done [#allocation16], 16
        $region76: #{tpu_custom_call.1} parent=47 // pred_fallthru
          _
        %370 = sfence
        %s371 = sand.u32 %s50, 1
        %s372 = scalar_lea.sflag [#allocation6], %s371
        %s373 = sand.u32 %s50, 1
        %s374 = smul.addr %s373, 48
        %s375 = scalar_lea.vmem [#allocation5], %s374
        %p376 = pneg %p63
        %p377 = pneg %p60
        %p378 = pneg %p84
        %p379 = pneg %p81
        %p380 = pneg %p105
        %p381 = pneg %p102
        %p382 = pneg %p126
        %p383 = pneg %p123
        %p384 = pneg %p147
        %p385 = pneg %p144
        %p386 = pneg %p168
        %p387 = pneg %p165
        %p388 = pneg %p189
        %p389 = pneg %p186
        %p390 = pneg %p215
        %p391 = pneg %p212
        %s392 = sand.u32 %s202, 1
        %s393 = scalar_lea.sflag [#allocation7], %s392
        %s394 = sand.u32 %s202, 1
        %s395 = smul.addr %s394, 24
        %s396 = scalar_lea.vmem [#allocation18], %s395
        %s397 = smul.u32 2, %s33
        %p398 = scmp.eq.s32.totalorder %s33, 0
        // Predicated region
        $region77: #{tpu_custom_call.1} parent=47 // pred_check
          %p399 = pneg %p398
        $region78: #{tpu_custom_call.1} parent=47 // pred_check_branch
          %401 = sbr.rel (%p399) target = $region80
        $region79: #{tpu_custom_call.1} parent=47 // pred_region
          %s402 = scalar_lea.smem [#allocation4], 0
          %403 = sst [smem:[%s402]] -1e+30
        $region80: #{tpu_custom_call.1} parent=47 // pred_fallthru
          _
        %v404 = vld [vmem:[%s341] sm:$0xff]
        %v405 = vld [vmem:[%s341 + $0x8] sm:$0xff]
        %v406 = vld [vmem:[%s341 + $0x10] sm:$0xff]
        %v407 = vld [vmem:[%s341 + $0x18] sm:$0xff]
        %v408 = vld [vmem:[%s341 + $0x20] sm:$0xff]
        %v409 = vld [vmem:[%s341 + $0x28] sm:$0xff]
        %v410 = vld [vmem:[#allocation9] sm:$0xff]
        %v411 = vld [vmem:[#allocation9 + $0x8] sm:$0xff]
        %v412 = vld [vmem:[#allocation9 + $0x10] sm:$0xff]
        %v413 = vld [vmem:[#allocation9 + $0x18] sm:$0xff]
        %v414 = vld [vmem:[#allocation9 + $0x20] sm:$0xff]
        %v415 = vld [vmem:[#allocation9 + $0x28] sm:$0xff]
        %v416 = vld [vmem:[#allocation9 + $0x30] sm:$0xff]
        %v417 = vld [vmem:[#allocation9 + $0x38] sm:$0xff]
        %v418 = vld [vmem:[#allocation9 + $0x40] sm:$0xff]
        %v419 = vld [vmem:[#allocation9 + $0x48] sm:$0xff]
        %v420 = vld [vmem:[#allocation9 + $0x50] sm:$0xff]
        %v421 = vld [vmem:[#allocation9 + $0x58] sm:$0xff]
        %v422 = vld [vmem:[#allocation9 + $0x60] sm:$0xff]
        %v423 = vld [vmem:[#allocation9 + $0x68] sm:$0xff]
        %v424 = vld [vmem:[#allocation9 + $0x70] sm:$0xff]
        %v425 = vld [vmem:[#allocation9 + $0x78] sm:$0xff]
        %v426 = vld [vmem:[#allocation9 + $0x80] sm:$0xff]
        %v427 = vld [vmem:[#allocation9 + $0x88] sm:$0xff]
        %v428 = vld [vmem:[#allocation9 + $0x90] sm:$0xff]
        %v429 = vld [vmem:[#allocation9 + $0x98] sm:$0xff]
        %v430 = vld [vmem:[#allocation9 + $0xa0] sm:$0xff]
        %v431 = vld [vmem:[#allocation9 + $0xa8] sm:$0xff]
        %v432 = vld [vmem:[#allocation9 + $0xb0] sm:$0xff]
        %v433 = vld [vmem:[#allocation9 + $0xb8] sm:$0xff]
        %v434 = vld [vmem:[#allocation9 + $0xc0] sm:$0xff]
        %v435 = vld [vmem:[#allocation9 + $0xc8] sm:$0xff]
        %v436 = vld [vmem:[#allocation9 + $0xd0] sm:$0xff]
        %v437 = vld [vmem:[#allocation9 + $0xd8] sm:$0xff]
        %v438 = vld [vmem:[#allocation9 + $0xe0] sm:$0xff]
        %v439 = vld [vmem:[#allocation9 + $0xe8] sm:$0xff]
        %v440 = vld [vmem:[#allocation9 + $0xf0] sm:$0xff]
        %v441 = vld [vmem:[#allocation9 + $0xf8] sm:$0xff]
        %v442 = vld [vmem:[#allocation9 + $0x100] sm:$0xff]
        %v443 = vld [vmem:[#allocation9 + $0x108] sm:$0xff]
        %v444 = vld [vmem:[#allocation9 + $0x110] sm:$0xff]
        %v445 = vld [vmem:[#allocation9 + $0x118] sm:$0xff]
        %v446 = vld [vmem:[#allocation9 + $0x120] sm:$0xff]
        %v447 = vld [vmem:[#allocation9 + $0x128] sm:$0xff]
        %v448 = vld [vmem:[#allocation9 + $0x130] sm:$0xff]
        %v449 = vld [vmem:[#allocation9 + $0x138] sm:$0xff]
        %v450 = vld [vmem:[#allocation9 + $0x140] sm:$0xff]
        %v451 = vld [vmem:[#allocation9 + $0x148] sm:$0xff]
        %v452 = vld [vmem:[#allocation9 + $0x150] sm:$0xff]
        %v453 = vld [vmem:[#allocation9 + $0x158] sm:$0xff]
        %v454 = vld [vmem:[#allocation9 + $0x160] sm:$0xff]
        %v455 = vld [vmem:[#allocation9 + $0x168] sm:$0xff]
        %v456 = vld [vmem:[#allocation9 + $0x170] sm:$0xff]
        %v457 = vld [vmem:[#allocation9 + $0x178] sm:$0xff]
        %v458 = vld [vmem:[#allocation9 + $0x180] sm:$0xff]
        %v459 = vld [vmem:[#allocation9 + $0x188] sm:$0xff]
        %v460 = vld [vmem:[#allocation9 + $0x190] sm:$0xff]
        %v461 = vld [vmem:[#allocation9 + $0x198] sm:$0xff]
        %v462 = vld [vmem:[#allocation9 + $0x1a0] sm:$0xff]
        %v463 = vld [vmem:[#allocation9 + $0x1a8] sm:$0xff]
        %v464 = vld [vmem:[#allocation9 + $0x1b0] sm:$0xff]
        %v465 = vld [vmem:[#allocation9 + $0x1b8] sm:$0xff]
        %v466 = vld [vmem:[#allocation9 + $0x1c0] sm:$0xff]
        %v467 = vld [vmem:[#allocation9 + $0x1c8] sm:$0xff]
        %v468 = vld [vmem:[#allocation9 + $0x1d0] sm:$0xff]
        %v469 = vld [vmem:[#allocation9 + $0x1d8] sm:$0xff]
        %v470 = vld [vmem:[#allocation9 + $0x1e0] sm:$0xff]
        %v471 = vld [vmem:[#allocation9 + $0x1e8] sm:$0xff]
        %v472 = vld [vmem:[#allocation9 + $0x1f0] sm:$0xff]
        %v473 = vld [vmem:[#allocation9 + $0x1f8] sm:$0xff]
        %v474 = vld [vmem:[#allocation9 + $0x200] sm:$0xff]
        %v475 = vld [vmem:[#allocation9 + $0x208] sm:$0xff]
        %v476 = vld [vmem:[#allocation9 + $0x210] sm:$0xff]
        %v477 = vld [vmem:[#allocation9 + $0x218] sm:$0xff]
        %v478 = vld [vmem:[#allocation9 + $0x220] sm:$0xff]
        %v479 = vld [vmem:[#allocation9 + $0x228] sm:$0xff]
        %v480 = vld [vmem:[#allocation9 + $0x230] sm:$0xff]
        %v481 = vld [vmem:[#allocation9 + $0x238] sm:$0xff]
        %v482 = vld [vmem:[#allocation9 + $0x240] sm:$0xff]
        %v483 = vld [vmem:[#allocation9 + $0x248] sm:$0xff]
        %v484 = vld [vmem:[#allocation9 + $0x250] sm:$0xff]
        %v485 = vld [vmem:[#allocation9 + $0x258] sm:$0xff]
        %v486 = vld [vmem:[#allocation9 + $0x260] sm:$0xff]
        %v487 = vld [vmem:[#allocation9 + $0x268] sm:$0xff]
        %v488 = vld [vmem:[#allocation9 + $0x270] sm:$0xff]
        %v489 = vld [vmem:[#allocation9 + $0x278] sm:$0xff]
        %v490 = vld [vmem:[#allocation9 + $0x280] sm:$0xff]
        %v491 = vld [vmem:[#allocation9 + $0x288] sm:$0xff]
        %v492 = vld [vmem:[#allocation9 + $0x290] sm:$0xff]
        %v493 = vld [vmem:[#allocation9 + $0x298] sm:$0xff]
        %v494 = vld [vmem:[#allocation9 + $0x2a0] sm:$0xff]
        %v495 = vld [vmem:[#allocation9 + $0x2a8] sm:$0xff]
        %v496 = vld [vmem:[#allocation9 + $0x2b0] sm:$0xff]
        %v497 = vld [vmem:[#allocation9 + $0x2b8] sm:$0xff]
        %v498 = vld [vmem:[#allocation9 + $0x2c0] sm:$0xff]
        %v499 = vld [vmem:[#allocation9 + $0x2c8] sm:$0xff]
        %v500 = vld [vmem:[#allocation9 + $0x2d0] sm:$0xff]
        %v501 = vld [vmem:[#allocation9 + $0x2d8] sm:$0xff]
        %v502 = vld [vmem:[#allocation9 + $0x2e0] sm:$0xff]
        %v503 = vld [vmem:[#allocation9 + $0x2e8] sm:$0xff]
        %v504 = vld [vmem:[#allocation9 + $0x2f0] sm:$0xff]
        %v505 = vld [vmem:[#allocation9 + $0x2f8] sm:$0xff]
        %v506 = vld [vmem:[#allocation9 + $0x300] sm:$0xff]
        %v507 = vld [vmem:[#allocation9 + $0x308] sm:$0xff]
        %v508 = vld [vmem:[#allocation9 + $0x310] sm:$0xff]
        %v509 = vld [vmem:[#allocation9 + $0x318] sm:$0xff]
        %v510 = vld [vmem:[#allocation9 + $0x320] sm:$0xff]
        %v511 = vld [vmem:[#allocation9 + $0x328] sm:$0xff]
        %v512 = vld [vmem:[#allocation9 + $0x330] sm:$0xff]
        %v513 = vld [vmem:[#allocation9 + $0x338] sm:$0xff]
        %v514 = vld [vmem:[#allocation9 + $0x340] sm:$0xff]
        %v515 = vld [vmem:[#allocation9 + $0x348] sm:$0xff]
        %v516 = vld [vmem:[#allocation9 + $0x350] sm:$0xff]
        %v517 = vld [vmem:[#allocation9 + $0x358] sm:$0xff]
        %v518 = vld [vmem:[#allocation9 + $0x360] sm:$0xff]
        %v519 = vld [vmem:[#allocation9 + $0x368] sm:$0xff]
        %v520 = vld [vmem:[#allocation9 + $0x370] sm:$0xff]
        %v521 = vld [vmem:[#allocation9 + $0x378] sm:$0xff]
        %v522 = vld [vmem:[#allocation9 + $0x380] sm:$0xff]
        %v523 = vld [vmem:[#allocation9 + $0x388] sm:$0xff]
        %v524 = vld [vmem:[#allocation9 + $0x390] sm:$0xff]
        %v525 = vld [vmem:[#allocation9 + $0x398] sm:$0xff]
        %v526 = vld [vmem:[#allocation9 + $0x3a0] sm:$0xff]
        %v527 = vld [vmem:[#allocation9 + $0x3a8] sm:$0xff]
        %v528 = vld [vmem:[#allocation9 + $0x3b0] sm:$0xff]
        %v529 = vld [vmem:[#allocation9 + $0x3b8] sm:$0xff]
        %v530 = vld [vmem:[#allocation9 + $0x3c0] sm:$0xff]
        %v531 = vld [vmem:[#allocation9 + $0x3c8] sm:$0xff]
        %v532 = vld [vmem:[#allocation9 + $0x3d0] sm:$0xff]
        %v533 = vld [vmem:[#allocation9 + $0x3d8] sm:$0xff]
        %v534 = vld [vmem:[#allocation9 + $0x3e0] sm:$0xff]
        %v535 = vld [vmem:[#allocation9 + $0x3e8] sm:$0xff]
        %v536 = vld [vmem:[#allocation9 + $0x3f0] sm:$0xff]
        %v537 = vld [vmem:[#allocation9 + $0x3f8] sm:$0xff]
        %v538 = vld [vmem:[#allocation9 + $0x400] sm:$0xff]
        %v539 = vld [vmem:[#allocation9 + $0x408] sm:$0xff]
        %v540 = vld [vmem:[#allocation9 + $0x410] sm:$0xff]
        %v541 = vld [vmem:[#allocation9 + $0x418] sm:$0xff]
        %v542 = vld [vmem:[#allocation9 + $0x420] sm:$0xff]
        %v543 = vld [vmem:[#allocation9 + $0x428] sm:$0xff]
        %v544 = vld [vmem:[#allocation9 + $0x430] sm:$0xff]
        %v545 = vld [vmem:[#allocation9 + $0x438] sm:$0xff]
        %v546 = vld [vmem:[#allocation9 + $0x440] sm:$0xff]
        %v547 = vld [vmem:[#allocation9 + $0x448] sm:$0xff]
        %v548 = vld [vmem:[#allocation9 + $0x450] sm:$0xff]
        %v549 = vld [vmem:[#allocation9 + $0x458] sm:$0xff]
        %v550 = vld [vmem:[#allocation9 + $0x460] sm:$0xff]
        %v551 = vld [vmem:[#allocation9 + $0x468] sm:$0xff]
        %v552 = vld [vmem:[#allocation9 + $0x470] sm:$0xff]
        %v553 = vld [vmem:[#allocation9 + $0x478] sm:$0xff]
        %554 = vmatprep.subr.mxu0 %v456
        %555 = vmatpush1.msra.mxu0 %v455
        %556 = vmatprep.subr.mxu0 %v453
        %557 = vmatpush1.msra.mxu0 %v452
        %558 = vmatprep.subr.mxu0 %v450
        %559 = vmatpush1.msra.mxu0 %v449
        %560 = vmatprep.subr.mxu0 %v447
        %561 = vmatpush1.msra.mxu0 %v446
        %562 = vmatprep.subr.mxu0 %v444
        %563 = vmatpush1.msra.mxu0 %v443
        %564 = vmatprep.subr.mxu0 %v441
        %565 = vmatpush1.msra.mxu0 %v440
        %566 = vmatprep.subr.mxu0 %v438
        %567 = vmatpush1.msra.mxu0 %v437
        %568 = vmatprep.subr.mxu0 %v435
        %569 = vmatpush1.msra.mxu0 %v434
        %570 = vmatprep.subr.mxu0 %v432
        %571 = vmatpush1.msra.mxu0 %v431
        %572 = vmatprep.subr.mxu0 %v429
        %573 = vmatpush1.msra.mxu0 %v428
        %574 = vmatprep.subr.mxu0 %v426
        %575 = vmatpush1.msra.mxu0 %v425
        %576 = vmatprep.subr.mxu0 %v423
        %577 = vmatpush1.msra.mxu0 %v422
        %578 = vmatprep.subr.mxu0 %v420
        %579 = vmatpush1.msra.mxu0 %v419
        %580 = vmatprep.subr.mxu0 %v417
        %581 = vmatpush1.msra.mxu0 %v416
        %582 = vmatprep.subr.mxu0 %v414
        %583 = vmatpush1.msra.mxu0 %v413
        %584 = vmatprep.subr.mxu0 %v411
        %585 = vmatpush1.msra.mxu0 %v410
        %586 = vmatprep.subr.mxu0 %v504
        %587 = vmatpush2.msra.mxu0 %v503
        %588 = vmatprep.subr.mxu0 %v501
        %589 = vmatpush2.msra.mxu0 %v500
        %590 = vmatprep.subr.mxu0 %v498
        %591 = vmatpush2.msra.mxu0 %v497
        %592 = vmatprep.subr.mxu0 %v495
        %593 = vmatpush2.msra.mxu0 %v494
        %594 = vmatprep.subr.mxu0 %v492
        %595 = vmatpush2.msra.mxu0 %v491
        %596 = vmatprep.subr.mxu0 %v489
        %597 = vmatpush2.msra.mxu0 %v488
        %598 = vmatprep.subr.mxu0 %v486
        %599 = vmatpush2.msra.mxu0 %v485
        %600 = vmatprep.subr.mxu0 %v483
        %601 = vmatpush2.msra.mxu0 %v482
        %602 = vmatprep.subr.mxu0 %v480
        %603 = vmatpush2.msra.mxu0 %v479
        %604 = vmatprep.subr.mxu0 %v477
        %605 = vmatpush2.msra.mxu0 %v476
        %606 = vmatprep.subr.mxu0 %v474
        %607 = vmatpush2.msra.mxu0 %v473
        %608 = vmatprep.subr.mxu0 %v471
        %609 = vmatpush2.msra.mxu0 %v470
        %610 = vmatprep.subr.mxu0 %v468
        %611 = vmatpush2.msra.mxu0 %v467
        %612 = vmatprep.subr.mxu0 %v465
        %613 = vmatpush2.msra.mxu0 %v464
        %614 = vmatprep.subr.mxu0 %v462
        %615 = vmatpush2.msra.mxu0 %v461
        %616 = vmatprep.subr.mxu0 %v459
        %617 = vmatpush2.msra.mxu0 %v458
        %618 = vmatprep.mubr.f32.mxu0 %v405
        %619 = vmatmul.mubr.f32.gmra.mxu0 %v404
        %v620 = vpop.f32.mrf.mxu0
        %v621 = vadd.f32 0.0, %v620
        %v622 = vpop.f32.mrf.mxu0
        %v623 = vadd.f32 0.0, %v622
        %624 = vmatprep.mubr.f32.mxu0 %v408
        %625 = vmatmul.mubr.f32.gmra.mxu0 %v407
        %v626 = vpop.f32.mrf.mxu0
        %v627 = vadd.f32 0.0, %v626
        %v628 = vpop.f32.mrf.mxu0
        %v629 = vadd.f32 0.0, %v628
        %630 = vdwg.mxu0
        %631 = vmatprep.subr.mxu0 %v552
        %632 = vmatpush1.msra.mxu0 %v551
        %633 = vmatprep.subr.mxu0 %v549
        %634 = vmatpush1.msra.mxu0 %v548
        %635 = vmatprep.subr.mxu0 %v546
        %636 = vmatpush1.msra.mxu0 %v545
        %637 = vmatprep.subr.mxu0 %v543
        %638 = vmatpush1.msra.mxu0 %v542
        %639 = vmatprep.subr.mxu0 %v540
        %640 = vmatpush1.msra.mxu0 %v539
        %641 = vmatprep.subr.mxu0 %v537
        %642 = vmatpush1.msra.mxu0 %v536
        %643 = vmatprep.subr.mxu0 %v534
        %644 = vmatpush1.msra.mxu0 %v533
        %645 = vmatprep.subr.mxu0 %v531
        %646 = vmatpush1.msra.mxu0 %v530
        %647 = vmatprep.subr.mxu0 %v528
        %648 = vmatpush1.msra.mxu0 %v527
        %649 = vmatprep.subr.mxu0 %v525
        %650 = vmatpush1.msra.mxu0 %v524
        %651 = vmatprep.subr.mxu0 %v522
        %652 = vmatpush1.msra.mxu0 %v521
        %653 = vmatprep.subr.mxu0 %v519
        %654 = vmatpush1.msra.mxu0 %v518
        %655 = vmatprep.subr.mxu0 %v516
        %656 = vmatpush1.msra.mxu0 %v515
        %657 = vmatprep.subr.mxu0 %v513
        %658 = vmatpush1.msra.mxu0 %v512
        %659 = vmatprep.subr.mxu0 %v510
        %660 = vmatpush1.msra.mxu0 %v509
        %661 = vmatprep.subr.mxu0 %v507
        %662 = vmatpush1.msra.mxu0 %v506
        %663 = vmatprep.subr.mxu0 0.0
        %664 = vmatpush2.msra.mxu0 0.0
        %665 = vmatprep.subr.mxu0 0.0
        %666 = vmatpush2.msra.mxu0 0.0
        %667 = vmatprep.subr.mxu0 0.0
        %668 = vmatpush2.msra.mxu0 0.0
        %669 = vmatprep.subr.mxu0 0.0
        %670 = vmatpush2.msra.mxu0 0.0
        %671 = vmatprep.subr.mxu0 0.0
        %672 = vmatpush2.msra.mxu0 0.0
        %673 = vmatprep.subr.mxu0 0.0
        %674 = vmatpush2.msra.mxu0 0.0
        %675 = vmatprep.subr.mxu0 0.0
        %676 = vmatpush2.msra.mxu0 0.0
        %677 = vmatprep.subr.mxu0 0.0
        %678 = vmatpush2.msra.mxu0 0.0
        %679 = vmatprep.subr.mxu0 0.0
        %680 = vmatpush2.msra.mxu0 0.0
        %681 = vmatprep.subr.mxu0 0.0
        %682 = vmatpush2.msra.mxu0 0.0
        %683 = vmatprep.subr.mxu0 0.0
        %684 = vmatpush2.msra.mxu0 0.0
        %685 = vmatprep.subr.mxu0 0.0
        %686 = vmatpush2.msra.mxu0 0.0
        %687 = vmatprep.subr.mxu0 0.0
        %688 = vmatpush2.msra.mxu0 0.0
        %689 = vmatprep.subr.mxu0 0.0
        %690 = vmatpush2.msra.mxu0 0.0
        %691 = vmatprep.subr.mxu0 0.0
        %692 = vmatpush2.msra.mxu0 0.0
        %693 = vmatprep.subr.mxu0 0.0
        %694 = vmatpush2.msra.mxu0 0.0
        %695 = vmatprep.mubr.f32.mxu0 0.0
        %696 = vmatmul.mubr.f32.gmra.mxu0 %v406
        %v697 = vpop.f32.mrf.mxu0
        %v698 = vadd.f32 %v621, %v697
        %v699 = vpop.f32.mrf.mxu0
        %v700 = vadd.f32 %v623, %v699
        %701 = vmatprep.mubr.f32.mxu0 0.0
        %702 = vmatmul.mubr.f32.gmra.mxu0 %v409
        %v703 = vpop.f32.mrf.mxu0
        %v704 = vadd.f32 %v627, %v703
        %v705 = vpop.f32.mrf.mxu0
        %v706 = vadd.f32 %v629, %v705
        %707 = vdwg.mxu0
        %708 = vmatprep.subr.mxu0 0.0
        %709 = vmatpush1.msra.mxu0 %v457
        %710 = vmatprep.subr.mxu0 0.0
        %711 = vmatpush1.msra.mxu0 %v454
        %712 = vmatprep.subr.mxu0 0.0
        %713 = vmatpush1.msra.mxu0 %v451
        %714 = vmatprep.subr.mxu0 0.0
        %715 = vmatpush1.msra.mxu0 %v448
        %716 = vmatprep.subr.mxu0 0.0
        %717 = vmatpush1.msra.mxu0 %v445
        %718 = vmatprep.subr.mxu0 0.0
        %719 = vmatpush1.msra.mxu0 %v442
        %720 = vmatprep.subr.mxu0 0.0
        %721 = vmatpush1.msra.mxu0 %v439
        %722 = vmatprep.subr.mxu0 0.0
        %723 = vmatpush1.msra.mxu0 %v436
        %724 = vmatprep.subr.mxu0 0.0
        %725 = vmatpush1.msra.mxu0 %v433
        %726 = vmatprep.subr.mxu0 0.0
        %727 = vmatpush1.msra.mxu0 %v430
        %728 = vmatprep.subr.mxu0 0.0
        %729 = vmatpush1.msra.mxu0 %v427
        %730 = vmatprep.subr.mxu0 0.0
        %731 = vmatpush1.msra.mxu0 %v424
        %732 = vmatprep.subr.mxu0 0.0
        %733 = vmatpush1.msra.mxu0 %v421
        %734 = vmatprep.subr.mxu0 0.0
        %735 = vmatpush1.msra.mxu0 %v418
        %736 = vmatprep.subr.mxu0 0.0
        %737 = vmatpush1.msra.mxu0 %v415
        %738 = vmatprep.subr.mxu0 0.0
        %739 = vmatpush1.msra.mxu0 %v412
        %740 = vmatprep.subr.mxu0 0.0
        %741 = vmatpush2.msra.mxu0 %v505
        %742 = vmatprep.subr.mxu0 0.0
        %743 = vmatpush2.msra.mxu0 %v502
        %744 = vmatprep.subr.mxu0 0.0
        %745 = vmatpush2.msra.mxu0 %v499
        %746 = vmatprep.subr.mxu0 0.0
        %747 = vmatpush2.msra.mxu0 %v496
        %748 = vmatprep.subr.mxu0 0.0
        %749 = vmatpush2.msra.mxu0 %v493
        %750 = vmatprep.subr.mxu0 0.0
        %751 = vmatpush2.msra.mxu0 %v490
        %752 = vmatprep.subr.mxu0 0.0
        %753 = vmatpush2.msra.mxu0 %v487
        %754 = vmatprep.subr.mxu0 0.0
        %755 = vmatpush2.msra.mxu0 %v484
        %756 = vmatprep.subr.mxu0 0.0
        %757 = vmatpush2.msra.mxu0 %v481
        %758 = vmatprep.subr.mxu0 0.0
        %759 = vmatpush2.msra.mxu0 %v478
        %760 = vmatprep.subr.mxu0 0.0
        %761 = vmatpush2.msra.mxu0 %v475
        %762 = vmatprep.subr.mxu0 0.0
        %763 = vmatpush2.msra.mxu0 %v472
        %764 = vmatprep.subr.mxu0 0.0
        %765 = vmatpush2.msra.mxu0 %v469
        %766 = vmatprep.subr.mxu0 0.0
        %767 = vmatpush2.msra.mxu0 %v466
        %768 = vmatprep.subr.mxu0 0.0
        %769 = vmatpush2.msra.mxu0 %v463
        %770 = vmatprep.subr.mxu0 0.0
        %771 = vmatpush2.msra.mxu0 %v460
        %772 = vmatprep.mubr.f32.mxu0 %v405
        %773 = vmatmul.mubr.f32.gmra.mxu0 %v404
        %v774 = vpop.f32.mrf.mxu0
        %v775 = vadd.f32 0.0, %v774
        %v776 = vpop.f32.mrf.mxu0
        %777 = vmatprep.mubr.f32.mxu0 %v408
        %778 = vmatmul.mubr.f32.gmra.mxu0 %v407
        %v779 = vpop.f32.mrf.mxu0
        %v780 = vadd.f32 0.0, %v779
        %v781 = vpop.f32.mrf.mxu0
        %782 = vdwg.mxu0
        %783 = vmatprep.subr.mxu0 0.0
        %784 = vmatpush1.msra.mxu0 %v553
        %785 = vmatprep.subr.mxu0 0.0
        %786 = vmatpush1.msra.mxu0 %v550
        %787 = vmatprep.subr.mxu0 0.0
        %788 = vmatpush1.msra.mxu0 %v547
        %789 = vmatprep.subr.mxu0 0.0
        %790 = vmatpush1.msra.mxu0 %v544
        %791 = vmatprep.subr.mxu0 0.0
        %792 = vmatpush1.msra.mxu0 %v541
        %793 = vmatprep.subr.mxu0 0.0
        %794 = vmatpush1.msra.mxu0 %v538
        %795 = vmatprep.subr.mxu0 0.0
        %796 = vmatpush1.msra.mxu0 %v535
        %797 = vmatprep.subr.mxu0 0.0
        %798 = vmatpush1.msra.mxu0 %v532
        %799 = vmatprep.subr.mxu0 0.0
        %800 = vmatpush1.msra.mxu0 %v529
        %801 = vmatprep.subr.mxu0 0.0
        %802 = vmatpush1.msra.mxu0 %v526
        %803 = vmatprep.subr.mxu0 0.0
        %804 = vmatpush1.msra.mxu0 %v523
        %805 = vmatprep.subr.mxu0 0.0
        %806 = vmatpush1.msra.mxu0 %v520
        %807 = vmatprep.subr.mxu0 0.0
        %808 = vmatpush1.msra.mxu0 %v517
        %809 = vmatprep.subr.mxu0 0.0
        %810 = vmatpush1.msra.mxu0 %v514
        %811 = vmatprep.subr.mxu0 0.0
        %812 = vmatpush1.msra.mxu0 %v511
        %813 = vmatprep.subr.mxu0 0.0
        %814 = vmatpush1.msra.mxu0 %v508
        %815 = vmatprep.subr.mxu0 0.0
        %816 = vmatpush2.msra.mxu0 0.0
        %817 = vmatprep.subr.mxu0 0.0
        %818 = vmatpush2.msra.mxu0 0.0
        %819 = vmatprep.subr.mxu0 0.0
        %820 = vmatpush2.msra.mxu0 0.0
        %821 = vmatprep.subr.mxu0 0.0
        %822 = vmatpush2.msra.mxu0 0.0
        %823 = vmatprep.subr.mxu0 0.0
        %824 = vmatpush2.msra.mxu0 0.0
        %825 = vmatprep.subr.mxu0 0.0
        %826 = vmatpush2.msra.mxu0 0.0
        %827 = vmatprep.subr.mxu0 0.0
        %828 = vmatpush2.msra.mxu0 0.0
        %829 = vmatprep.subr.mxu0 0.0
        %830 = vmatpush2.msra.mxu0 0.0
        %831 = vmatprep.subr.mxu0 0.0
        %832 = vmatpush2.msra.mxu0 0.0
        %833 = vmatprep.subr.mxu0 0.0
        %834 = vmatpush2.msra.mxu0 0.0
        %835 = vmatprep.subr.mxu0 0.0
        %836 = vmatpush2.msra.mxu0 0.0
        %837 = vmatprep.subr.mxu0 0.0
        %838 = vmatpush2.msra.mxu0 0.0
        %839 = vmatprep.subr.mxu0 0.0
        %840 = vmatpush2.msra.mxu0 0.0
        %841 = vmatprep.subr.mxu0 0.0
        %842 = vmatpush2.msra.mxu0 0.0
        %843 = vmatprep.subr.mxu0 0.0
        %844 = vmatpush2.msra.mxu0 0.0
        %845 = vmatprep.subr.mxu0 0.0
        %846 = vmatpush2.msra.mxu0 0.0
        %847 = vmatprep.mubr.f32.mxu0 0.0
        %848 = vmatmul.mubr.f32.gmra.mxu0 %v406
        %v849 = vpop.f32.mrf.mxu0
        %v850 = vadd.f32 %v775, %v849
        %v851 = vpop.f32.mrf.mxu0
        %852 = vmatprep.mubr.f32.mxu0 0.0
        %853 = vmatmul.mubr.f32.gmra.mxu0 %v409
        %v854 = vpop.f32.mrf.mxu0
        %v855 = vadd.f32 %v780, %v854
        %v856 = vpop.f32.mrf.mxu0
        %857 = vdwg.mxu0
        %v858 = vmul.f32 %v698, %v698
        %v859 = vmul.f32 %v700, %v700
        %v860 = vmul.f32 %v850, %v850
        %v861 = vmul.f32 %v704, %v704
        %v862 = vmul.f32 %v706, %v706
        %v863 = vmul.f32 %v855, %v855
        %v864 = vld [vmem:[#allocation11] sm:$0xff]
        %v865 = vld [vmem:[#allocation11 + $0x8] sm:$0xff]
        %v866 = vld [vmem:[#allocation11 + $0x10] sm:$0xff]
        %v867 = vld [vmem:[#allocation11 + $0x18] sm:$0xff]
        %v868 = vld [vmem:[#allocation11 + $0x20] sm:$0xff]
        %v869 = vld [vmem:[#allocation11 + $0x28] sm:$0xff]
        %v870 = vld [vmem:[#allocation11 + $0x30] sm:$0xff]
        %v871 = vld [vmem:[#allocation11 + $0x38] sm:$0xff]
        %v872 = vld [vmem:[#allocation11 + $0x40] sm:$0xff]
        %v873 = vld [vmem:[#allocation11 + $0x48] sm:$0xff]
        %v874 = vld [vmem:[#allocation11 + $0x50] sm:$0xff]
        %v875 = vld [vmem:[#allocation11 + $0x58] sm:$0xff]
        %v876 = vld [vmem:[#allocation11 + $0x60] sm:$0xff]
        %v877 = vld [vmem:[#allocation11 + $0x68] sm:$0xff]
        %v878 = vld [vmem:[#allocation11 + $0x70] sm:$0xff]
        %v879 = vld [vmem:[#allocation11 + $0x78] sm:$0xff]
        %v880 = vld [vmem:[#allocation11 + $0x80] sm:$0xff]
        %v881 = vld [vmem:[#allocation11 + $0x88] sm:$0xff]
        %v882 = vld [vmem:[#allocation11 + $0x90] sm:$0xff]
        %v883 = vld [vmem:[#allocation11 + $0x98] sm:$0xff]
        %v884 = vld [vmem:[#allocation11 + $0xa0] sm:$0xff]
        %v885 = vld [vmem:[#allocation11 + $0xa8] sm:$0xff]
        %v886 = vld [vmem:[#allocation11 + $0xb0] sm:$0xff]
        %v887 = vld [vmem:[#allocation11 + $0xb8] sm:$0xff]
        %v888 = vld [vmem:[#allocation11 + $0xc0] sm:$0xff]
        %v889 = vld [vmem:[#allocation11 + $0xc8] sm:$0xff]
        %v890 = vld [vmem:[#allocation11 + $0xd0] sm:$0xff]
        %v891 = vld [vmem:[#allocation11 + $0xd8] sm:$0xff]
        %v892 = vld [vmem:[#allocation11 + $0xe0] sm:$0xff]
        %v893 = vld [vmem:[#allocation11 + $0xe8] sm:$0xff]
        %v894 = vld [vmem:[#allocation11 + $0xf0] sm:$0xff]
        %v895 = vld [vmem:[#allocation11 + $0xf8] sm:$0xff]
        %v896 = vld [vmem:[#allocation11 + $0x100] sm:$0xff]
        %v897 = vld [vmem:[#allocation11 + $0x108] sm:$0xff]
        %v898 = vld [vmem:[#allocation11 + $0x110] sm:$0xff]
        %v899 = vld [vmem:[#allocation11 + $0x118] sm:$0xff]
        %v900 = vld [vmem:[#allocation11 + $0x120] sm:$0xff]
        %v901 = vld [vmem:[#allocation11 + $0x128] sm:$0xff]
        %v902 = vld [vmem:[#allocation11 + $0x130] sm:$0xff]
        %v903 = vld [vmem:[#allocation11 + $0x138] sm:$0xff]
        %v904 = vld [vmem:[#allocation11 + $0x140] sm:$0xff]
        %v905 = vld [vmem:[#allocation11 + $0x148] sm:$0xff]
        %v906 = vld [vmem:[#allocation11 + $0x150] sm:$0xff]
        %v907 = vld [vmem:[#allocation11 + $0x158] sm:$0xff]
        %v908 = vld [vmem:[#allocation11 + $0x160] sm:$0xff]
        %v909 = vld [vmem:[#allocation11 + $0x168] sm:$0xff]
        %v910 = vld [vmem:[#allocation11 + $0x170] sm:$0xff]
        %v911 = vld [vmem:[#allocation11 + $0x178] sm:$0xff]
        %912 = vmatprep.subr.mxu0 0.0
        %913 = vmatpush1.msra.mxu0 %v879
        %914 = vmatprep.subr.mxu0 0.0
        %915 = vmatpush1.msra.mxu0 %v878
        %916 = vmatprep.subr.mxu0 0.0
        %917 = vmatpush1.msra.mxu0 %v877
        %918 = vmatprep.subr.mxu0 0.0
        %919 = vmatpush1.msra.mxu0 %v876
        %920 = vmatprep.subr.mxu0 0.0
        %921 = vmatpush1.msra.mxu0 %v875
        %922 = vmatprep.subr.mxu0 0.0
        %923 = vmatpush1.msra.mxu0 %v874
        %924 = vmatprep.subr.mxu0 0.0
        %925 = vmatpush1.msra.mxu0 %v873
        %926 = vmatprep.subr.mxu0 0.0
        %927 = vmatpush1.msra.mxu0 %v872
        %928 = vmatprep.subr.mxu0 0.0
        %929 = vmatpush1.msra.mxu0 %v871
        %930 = vmatprep.subr.mxu0 0.0
        %931 = vmatpush1.msra.mxu0 %v870
        %932 = vmatprep.subr.mxu0 0.0
        %933 = vmatpush1.msra.mxu0 %v869
        %934 = vmatprep.subr.mxu0 0.0
        %935 = vmatpush1.msra.mxu0 %v868
        %936 = vmatprep.subr.mxu0 0.0
        %937 = vmatpush1.msra.mxu0 %v867
        %938 = vmatprep.subr.mxu0 0.0
        %939 = vmatpush1.msra.mxu0 %v866
        %940 = vmatprep.subr.mxu0 0.0
        %941 = vmatpush1.msra.mxu0 %v865
        %942 = vmatprep.subr.mxu0 0.0
        %943 = vmatpush1.msra.mxu0 %v864
        %944 = vmatprep.subr.mxu0 0.0
        %945 = vmatpush2.msra.mxu0 %v895
        %946 = vmatprep.subr.mxu0 0.0
        %947 = vmatpush2.msra.mxu0 %v894
        %948 = vmatprep.subr.mxu0 0.0
        %949 = vmatpush2.msra.mxu0 %v893
        %950 = vmatprep.subr.mxu0 0.0
        %951 = vmatpush2.msra.mxu0 %v892
        %952 = vmatprep.subr.mxu0 0.0
        %953 = vmatpush2.msra.mxu0 %v891
        %954 = vmatprep.subr.mxu0 0.0
        %955 = vmatpush2.msra.mxu0 %v890
        %956 = vmatprep.subr.mxu0 0.0
        %957 = vmatpush2.msra.mxu0 %v889
        %958 = vmatprep.subr.mxu0 0.0
        %959 = vmatpush2.msra.mxu0 %v888
        %960 = vmatprep.subr.mxu0 0.0
        %961 = vmatpush2.msra.mxu0 %v887
        %962 = vmatprep.subr.mxu0 0.0
        %963 = vmatpush2.msra.mxu0 %v886
        %964 = vmatprep.subr.mxu0 0.0
        %965 = vmatpush2.msra.mxu0 %v885
        %966 = vmatprep.subr.mxu0 0.0
        %967 = vmatpush2.msra.mxu0 %v884
        %968 = vmatprep.subr.mxu0 0.0
        %969 = vmatpush2.msra.mxu0 %v883
        %970 = vmatprep.subr.mxu0 0.0
        %971 = vmatpush2.msra.mxu0 %v882
        %972 = vmatprep.subr.mxu0 0.0
        %973 = vmatpush2.msra.mxu0 %v881
        %974 = vmatprep.subr.mxu0 0.0
        %975 = vmatpush2.msra.mxu0 %v880
        %976 = vmatprep.mubr.f32.mxu0 %v859
        %977 = vmatmul.mubr.f32.gmra.mxu0 %v858
        %v978 = vpop.f32.mrf.mxu0
        %v979 = vadd.f32 0.0, %v978
        %v980 = vpop.f32.mrf.mxu0
        %981 = vmatprep.mubr.f32.mxu0 %v862
        %982 = vmatmul.mubr.f32.gmra.mxu0 %v861
        %v983 = vpop.f32.mrf.mxu0
        %v984 = vadd.f32 0.0, %v983
        %v985 = vpop.f32.mrf.mxu0
        %986 = vdwg.mxu0
        %987 = vmatprep.subr.mxu0 0.0
        %988 = vmatpush1.msra.mxu0 %v911
        %989 = vmatprep.subr.mxu0 0.0
        %990 = vmatpush1.msra.mxu0 %v910
        %991 = vmatprep.subr.mxu0 0.0
        %992 = vmatpush1.msra.mxu0 %v909
        %993 = vmatprep.subr.mxu0 0.0
        %994 = vmatpush1.msra.mxu0 %v908
        %995 = vmatprep.subr.mxu0 0.0
        %996 = vmatpush1.msra.mxu0 %v907
        %997 = vmatprep.subr.mxu0 0.0
        %998 = vmatpush1.msra.mxu0 %v906
        %999 = vmatprep.subr.mxu0 0.0
        %1000 = vmatpush1.msra.mxu0 %v905
        %1001 = vmatprep.subr.mxu0 0.0
        %1002 = vmatpush1.msra.mxu0 %v904
        %1003 = vmatprep.subr.mxu0 0.0
        %1004 = vmatpush1.msra.mxu0 %v903
        %1005 = vmatprep.subr.mxu0 0.0
        %1006 = vmatpush1.msra.mxu0 %v902
        %1007 = vmatprep.subr.mxu0 0.0
        %1008 = vmatpush1.msra.mxu0 %v901
        %1009 = vmatprep.subr.mxu0 0.0
        %1010 = vmatpush1.msra.mxu0 %v900
        %1011 = vmatprep.subr.mxu0 0.0
        %1012 = vmatpush1.msra.mxu0 %v899
        %1013 = vmatprep.subr.mxu0 0.0
        %1014 = vmatpush1.msra.mxu0 %v898
        %1015 = vmatprep.subr.mxu0 0.0
        %1016 = vmatpush1.msra.mxu0 %v897
        %1017 = vmatprep.subr.mxu0 0.0
        %1018 = vmatpush1.msra.mxu0 %v896
        %1019 = vmatprep.subr.mxu0 0.0
        %1020 = vmatpush2.msra.mxu0 0.0
        %1021 = vmatprep.subr.mxu0 0.0
        %1022 = vmatpush2.msra.mxu0 0.0
        %1023 = vmatprep.subr.mxu0 0.0
        %1024 = vmatpush2.msra.mxu0 0.0
        %1025 = vmatprep.subr.mxu0 0.0
        %1026 = vmatpush2.msra.mxu0 0.0
        %1027 = vmatprep.subr.mxu0 0.0
        %1028 = vmatpush2.msra.mxu0 0.0
        %1029 = vmatprep.subr.mxu0 0.0
        %1030 = vmatpush2.msra.mxu0 0.0
        %1031 = vmatprep.subr.mxu0 0.0
        %1032 = vmatpush2.msra.mxu0 0.0
        %1033 = vmatprep.subr.mxu0 0.0
        %1034 = vmatpush2.msra.mxu0 0.0
        %1035 = vmatprep.subr.mxu0 0.0
        %1036 = vmatpush2.msra.mxu0 0.0
        %1037 = vmatprep.subr.mxu0 0.0
        %1038 = vmatpush2.msra.mxu0 0.0
        %1039 = vmatprep.subr.mxu0 0.0
        %1040 = vmatpush2.msra.mxu0 0.0
        %1041 = vmatprep.subr.mxu0 0.0
        %1042 = vmatpush2.msra.mxu0 0.0
        %1043 = vmatprep.subr.mxu0 0.0
        %1044 = vmatpush2.msra.mxu0 0.0
        %1045 = vmatprep.subr.mxu0 0.0
        %1046 = vmatpush2.msra.mxu0 0.0
        %1047 = vmatprep.subr.mxu0 0.0
        %1048 = vmatpush2.msra.mxu0 0.0
        %1049 = vmatprep.subr.mxu0 0.0
        %1050 = vmatpush2.msra.mxu0 0.0
        %1051 = vmatprep.mubr.f32.mxu0 0.0
        %1052 = vmatmul.mubr.f32.gmra.mxu0 %v860
        %v1053 = vpop.f32.mrf.mxu0
        %v1054 = vadd.f32 %v979, %v1053
        %v1055 = vpop.f32.mrf.mxu0
        %1056 = vmatprep.mubr.f32.mxu0 0.0
        %1057 = vmatmul.mubr.f32.gmra.mxu0 %v863
        %v1058 = vpop.f32.mrf.mxu0
        %v1059 = vadd.f32 %v984, %v1058
        %v1060 = vpop.f32.mrf.mxu0
        %1061 = vdwg.mxu0
        %v1062 = vmax.f32 %v1054, 1e-10
        %v1063 = vmax.f32 %v1059, 1e-10
        %v1064 = vlog2.pop %v1062
        %v1065 = vmul.f32 %v1064, 0.6931472
        %v1066 = vlog2.pop %v1063
        %v1067 = vmul.f32 %v1066, 0.6931472
        %v1068 = vmul.f32 %v1065, 4.3429446
        %v1069 = vmul.f32 %v1067, 4.3429446
        %s1070 = sld [smem:[#allocation4]]
        %v1071 = vmax.f32 %v1068, %v1069
        %1072 = vmax.xlane.f32.xlu0 %v1071
        %v1073 = vpop.xlane.xlu0 %1072
        %v1074 = vrot.slane %v1073, 4
        %v1075 = vmax.f32 %v1073, %v1074
        %v1076 = vrot.slane %v1075, 2
        %v1077 = vmax.f32 %v1075, %v1076
        %v1078 = vrot.slane %v1077, 1
        %v1079 = vmax.f32 %v1077, %v1078
        %s1080 = vtos %v1079
        %s1081 = smax.f32 %s1070, %s1080
        %s1082 = scalar_lea.smem [#allocation4], 0
        %1083 = sst [smem:[%s1082]] %s1081
        %s1084 = smul.u32 %s33, 16
        %s1085 = scalar_lea.vmem [#allocation2], %s1084
        %1086 = vst [vmem:[%s1085] sm:$0xff] %v1068
        %1087 = vst [vmem:[%s1085 + $0x8] sm:$0xff] %v1069
        // Predicated region
        $region81: #{tpu_custom_call.1} parent=47 // pred_check
          %p1088 = pneg %p398
        $region82: #{tpu_custom_call.1} parent=47 // pred_check_branch
          %1090 = sbr.rel (%p1088) target = $region84
        $region83: #{tpu_custom_call.1} parent=47 // pred_region
          %v1091 = vld [vmem:[#allocation2] sm:$0xff]
          %v1092 = vld [vmem:[#allocation2 + $0x8] sm:$0xff]
          %s1093 = sld [smem:[#allocation4]]
          %s1094 = ssub.f32 %s1093, 80.0
          %v1095 = vstv %s1094
          %v1096 = vmax.f32 %v1091, %v1095
          %v1097 = vmax.f32 %v1092, %v1095
          %v1098 = vld [vmem:[#allocation12] sm:$0xff]
          %v1099 = vld [vmem:[#allocation12 + $0x8] sm:$0xff]
          %v1100 = vld [vmem:[#allocation12 + $0x10] sm:$0xff]
          %v1101 = vld [vmem:[#allocation12 + $0x18] sm:$0xff]
          %v1102 = vld [vmem:[#allocation12 + $0x20] sm:$0xff]
          %v1103 = vld [vmem:[#allocation12 + $0x28] sm:$0xff]
          %v1104 = vld [vmem:[#allocation12 + $0x30] sm:$0xff]
          %v1105 = vld [vmem:[#allocation12 + $0x38] sm:$0xff]
          %v1106 = vld [vmem:[#allocation12 + $0x40] sm:$0xff]
          %v1107 = vld [vmem:[#allocation12 + $0x48] sm:$0xff]
          %v1108 = vld [vmem:[#allocation12 + $0x50] sm:$0xff]
          %v1109 = vld [vmem:[#allocation12 + $0x58] sm:$0xff]
          %v1110 = vld [vmem:[#allocation12 + $0x60] sm:$0xff]
          %v1111 = vld [vmem:[#allocation12 + $0x68] sm:$0xff]
          %v1112 = vld [vmem:[#allocation12 + $0x70] sm:$0xff]
          %v1113 = vld [vmem:[#allocation12 + $0x78] sm:$0xff]
          %1114 = vmatprep.subr.mxu0 0.0
          %1115 = vmatpush1.msra.mxu0 %v1113
          %1116 = vmatprep.subr.mxu0 0.0
          %1117 = vmatpush1.msra.mxu0 %v1112
          %1118 = vmatprep.subr.mxu0 0.0
          %1119 = vmatpush1.msra.mxu0 %v1111
          %1120 = vmatprep.subr.mxu0 0.0
          %1121 = vmatpush1.msra.mxu0 %v1110
          %1122 = vmatprep.subr.mxu0 0.0
          %1123 = vmatpush1.msra.mxu0 %v1109
          %1124 = vmatprep.subr.mxu0 0.0
          %1125 = vmatpush1.msra.mxu0 %v1108
          %1126 = vmatprep.subr.mxu0 0.0
          %1127 = vmatpush1.msra.mxu0 %v1107
          %1128 = vmatprep.subr.mxu0 0.0
          %1129 = vmatpush1.msra.mxu0 %v1106
          %1130 = vmatprep.subr.mxu0 0.0
          %1131 = vmatpush1.msra.mxu0 %v1105
          %1132 = vmatprep.subr.mxu0 0.0
          %1133 = vmatpush1.msra.mxu0 %v1104
          %1134 = vmatprep.subr.mxu0 0.0
          %1135 = vmatpush1.msra.mxu0 %v1103
          %1136 = vmatprep.subr.mxu0 0.0
          %1137 = vmatpush1.msra.mxu0 %v1102
          %1138 = vmatprep.subr.mxu0 0.0
          %1139 = vmatpush1.msra.mxu0 %v1101
          %1140 = vmatprep.subr.mxu0 0.0
          %1141 = vmatpush1.msra.mxu0 %v1100
          %1142 = vmatprep.subr.mxu0 0.0
          %1143 = vmatpush1.msra.mxu0 %v1099
          %1144 = vmatprep.subr.mxu0 0.0
          %1145 = vmatpush1.msra.mxu0 %v1098
          %1146 = vmatprep.subr.mxu0 0.0
          %1147 = vmatpush2.msra.mxu0 0.0
          %1148 = vmatprep.subr.mxu0 0.0
          %1149 = vmatpush2.msra.mxu0 0.0
          %1150 = vmatprep.subr.mxu0 0.0
          %1151 = vmatpush2.msra.mxu0 0.0
          %1152 = vmatprep.subr.mxu0 0.0
          %1153 = vmatpush2.msra.mxu0 0.0
          %1154 = vmatprep.subr.mxu0 0.0
          %1155 = vmatpush2.msra.mxu0 0.0
          %1156 = vmatprep.subr.mxu0 0.0
          %1157 = vmatpush2.msra.mxu0 0.0
          %1158 = vmatprep.subr.mxu0 0.0
          %1159 = vmatpush2.msra.mxu0 0.0
          %1160 = vmatprep.subr.mxu0 0.0
          %1161 = vmatpush2.msra.mxu0 0.0
          %1162 = vmatprep.subr.mxu0 0.0
          %1163 = vmatpush2.msra.mxu0 0.0
          %1164 = vmatprep.subr.mxu0 0.0
          %1165 = vmatpush2.msra.mxu0 0.0
          %1166 = vmatprep.subr.mxu0 0.0
          %1167 = vmatpush2.msra.mxu0 0.0
          %1168 = vmatprep.subr.mxu0 0.0
          %1169 = vmatpush2.msra.mxu0 0.0
          %1170 = vmatprep.subr.mxu0 0.0
          %1171 = vmatpush2.msra.mxu0 0.0
          %1172 = vmatprep.subr.mxu0 0.0
          %1173 = vmatpush2.msra.mxu0 0.0
          %1174 = vmatprep.subr.mxu0 0.0
          %1175 = vmatpush2.msra.mxu0 0.0
          %1176 = vmatprep.subr.mxu0 0.0
          %1177 = vmatpush2.msra.mxu0 0.0
          %1178 = vmatprep.mubr.f32.mxu0 0.0
          %1179 = vmatmul.mubr.f32.gmra.mxu0 %v1096
          %v1180 = vpop.f32.mrf.mxu0
          %v1181 = vadd.f32 0.0, %v1180
          %v1182 = vpop.f32.mrf.mxu0
          %1183 = vmatprep.mubr.f32.mxu0 0.0
          %1184 = vmatmul.mubr.f32.gmra.mxu0 %v1097
          %v1185 = vpop.f32.mrf.mxu0
          %v1186 = vadd.f32 0.0, %v1185
          %v1187 = vpop.f32.mrf.mxu0
          %1188 = vdwg.mxu0
          %1189 = vst [vmem:[#allocation3] sm:$0xff] %v1181
          %1190 = vst [vmem:[#allocation3 + $0x8] sm:$0xff] %v1186
          loop: start=0, step=1, limit=24
          $region85: #{tpu_custom_call.1} parent=83 // loop_pre_header
            _
          $region86: #{tpu_custom_call.1} parent=83 // loop_header
            %s1192 = sphi 0, %s1196
            %p1193 = scmp.ge.s32.totalorder %s1192, 24
          $region87: #{tpu_custom_call.1} parent=83 // loop_header_branch
            %1195 = sbr.rel (%p1193) target = $region91
          $region88: #{tpu_custom_call.1} parent=83 // loop_body
            %s1197 = sld [smem:[#allocation14 + %s1192]]
            %s1198 = sld [smem:[#allocation15 + %s1192]]
            %s1199 = sld [smem:[#allocation17 + %s1192]]
            %s1200 = ssub.f32 1.0, %s1199
            %s1201 = scalar_lea.vmem [#allocation3], %s1197
            %v1202 = vld [vmem:[%s1201] sm:$0x1]
            %v1203 = vstv %s1200
            %v1204 = vmul.f32 %v1203, %v1202
            %s1205 = scalar_lea.vmem [#allocation3], %s1198
            %v1206 = vld [vmem:[%s1205] sm:$0x1]
            %v1207 = vstv %s1199
            %v1208 = vmul.f32 %v1207, %v1206
            %v1209 = vadd.f32 %v1204, %v1208
            %s1210 = scalar_lea.vmem %s396, %s1192 [#allocation18]
            %1211 = vst [vmem:[%s1210] sm:$0x1] %v1209
          $region89: #{tpu_custom_call.1} parent=83 // loop_footer
            %s1196 = sadd.s32 1, %s1192
          $region90: #{tpu_custom_call.1} parent=83 // loop_footer_branch
            %1191 = sbr.rel target = $region86
          $region91: #{tpu_custom_call.1} parent=83 // loop_exit
            _
        $region84: #{tpu_custom_call.1} parent=47 // pred_fallthru
          _
        %s1212 = sand.u32 %s202, 1
        %s1213 = scalar_lea.sflag [#allocation7], %s1212
        %s1214 = sand.u32 %s202, 1
        %s1215 = smul.addr %s1214, 24
        %s1216 = scalar_lea.vmem [#allocation18], %s1215
        // Predicated region
        $region92: #{tpu_custom_call.1} parent=47 // pred_check
          %p1217 = pneg %p212
        $region93: #{tpu_custom_call.1} parent=47 // pred_check_branch
          %1219 = sbr.rel (%p1217) target = $region95
        $region94: #{tpu_custom_call.1} parent=47 // pred_region
          %s1221 = ssub.s32 384, 384
          %1222 = vsyncadd %s1213, %s1221
          %s1223 = smul.addr %s32, 3
          %s1224 = smul.addr %s1223, 128
          %s1225 = scalar_lea.hbm %s7, %s1224
          %s1226 = sshll.u32 %s1216, 4
          %s1227 = int_to_ptr.vmem [resolvable:$true] %s1226
          %1232 = dma.vmem_to_hbm [thread:$0]  %s1227, 384, %s1225, %s1213, 128, 128, 8
        $region95: #{tpu_custom_call.1} parent=47 // pred_fallthru
          _
      $region48: #{tpu_custom_call.1} parent=5 // pred_fallthru
        _
      %p1233 = scmp.le.s32.totalorder 2, %s23
      // Predicated region
      $region96: #{tpu_custom_call.1} parent=5 // pred_check
        %p1234 = pneg %p1233
      $region97: #{tpu_custom_call.1} parent=5 // pred_check_branch
        %1236 = sbr.rel (%p1234) target = $region99
      $region98: #{tpu_custom_call.1} parent=5 // pred_region
        %s1237 = ssub.s32 %s23, 2
        // Predicated region
        $region100: #{tpu_custom_call.1} parent=98 // pred_check
          %p1238 = pneg %p218
        $region101: #{tpu_custom_call.1} parent=98 // pred_check_branch
          %1240 = sbr.rel (%p1238) target = $region103
        $region102: #{tpu_custom_call.1} parent=98 // pred_region
          %s1241 = sand.u32 %s203, 1
          %s1242 = scalar_lea.sflag [#allocation7], %s1241
          %s1243 = sand.u32 %s203, 1
          %s1244 = smul.addr %s1243, 24
          %s1245 = scalar_lea.vmem [#allocation18], %s1244
          %1246 = dma.done %s1242, 384
        $region103: #{tpu_custom_call.1} parent=98 // pred_fallthru
          _
      $region99: #{tpu_custom_call.1} parent=5 // pred_fallthru
        _
    $region6: #{tpu_custom_call.1} parent=1 // loop_footer
      %s27 = sadd.s32 1, %s23
    $region7: #{tpu_custom_call.1} parent=1 // loop_footer_branch
      %22 = sbr.rel target = $region3
    $region8: #{tpu_custom_call.1} parent=1 // loop_exit
      _
    %1247 = vsyncpa [#allocation6], 1
    %s1248 = scalar_lea.sflag [#allocation6], 1
    %1249 = vsyncpa %s1248, 1
    %1250 = vsyncpa [#allocation10], 1
    %1251 = vsyncpa [#allocation13], 1
    %1252 = vsyncpa [#allocation7], 1
    %s1253 = scalar_lea.sflag [#allocation7], 1
    %1254 = vsyncpa %s1253, 1
    %1255 = vsyncpa [#allocation8], 1
    %s1256 = scalar_lea.sflag [#allocation8], 1
    %1257 = vsyncpa %s1256, 1
    %1258 = vsyncpa [#allocation16], 1

</llo_original>
